<compile_context>
chip_gen: v5e
topology: v5e:2x2
jax: 0.10.0
libtpu: 0.0.40
codegen_flags: <defaults>
</compile_context>

<pallas_src>
import functools
import math

import jax
import jax.numpy as jnp
import numpy as np
from jax.experimental import pallas as pl
from jax.experimental.pallas import tpu as pltpu

LANE = 128


def _round_up(x, m):
    return (x + m - 1) // m * m


# ------------------------------- Pallas kernel --------------------------------


def _layernorm(x, gamma, beta, inv_n, eps=1e-5):
    """LayerNorm over the last axis.  Assumes padded lanes of x are exactly zero,
    so plain sums * (1 / D_real) give the masked mean / E[x^2]."""
    mu = jnp.sum(x, axis=-1, keepdims=True) * inv_n
    ex2 = jnp.sum(x * x, axis=-1, keepdims=True) * inv_n
    var = ex2 - mu * mu
    return (x - mu) * jax.lax.rsqrt(var + eps) * gamma + beta


def fused_transformer_kernel(x_ref, wslab_ref, w2_ref, vec_ref, wout_ref, bout_ref,
                             logits_ref, x_scr,
                             *, num_heads, d_real, dh_real, dp, fp):
    """Grid = (batch, layer).  One batch element per step; the activation is resident
    in the x_scr VMEM scratch across the sequential layer axis; logits are produced
    (and written back to HBM) only at the last layer."""
    layer = pl.program_id(1)
    num_layers = pl.num_programs(1)
    H = num_heads
    Dp, Fp = dp, fp
    Dhp = Dp // H
    inv_d = 1.0 / d_real
    scale = 1.0 / math.sqrt(dh_real)

    # Seed the resident activation from the embedded input at layer 0.
    @pl.when(layer == 0)
    def _():
        x_scr[...] = x_ref[0]

    x = x_scr[...]                                   # (S, Dp) f32, pad lanes == 0
    S = x.shape[0]

    # ---- per-layer params: 3 slab loads (vs 16 small DMAs before) ----
    w_all = wslab_ref[0]                             # (Dp, 4*Dp + Fp) bf16
    w2 = w2_ref[0]                                   # (Fp, Dp)        bf16
    vec = vec_ref[0]                                 # (10, C)         f32
    ln1_g, ln1_b = vec[0:1, :Dp], vec[1:2, :Dp]
    b_q, b_k, b_v = vec[2:3, :Dp], vec[3:4, :Dp], vec[4:5, :Dp]
    b_o = vec[5:6, :Dp]
    ln2_g, ln2_b = vec[6:7, :Dp], vec[7:8, :Dp]
    b_1 = vec[8:9, :Fp]
    b_2 = vec[9:10, :Dp]

    # ---- x <- ln1(x); attention residual uses the normed x (matches TFBlock) ----
    xn = _layernorm(x, ln1_g, ln1_b, inv_d)
    xn_b = xn.astype(jnp.bfloat16)

    # ---- MHA: full-width QKV projection (K = Dp), heads split only for scores ----
    qkv = jnp.dot(xn_b, w_all[:, 0:3 * Dp],
                  preferred_element_type=jnp.float32)               # (S, 3*Dp) f32
    q = (qkv[:, 0 * Dp:1 * Dp] + b_q).astype(jnp.bfloat16)
    k = (qkv[:, 1 * Dp:2 * Dp] + b_k).astype(jnp.bfloat16)
    v = (qkv[:, 2 * Dp:3 * Dp] + b_v).astype(jnp.bfloat16)
    # head h lives in lanes [h*Dhp, (h+1)*Dhp); pad lanes inside each head are zero.
    q3 = jnp.stack([q[:, h * Dhp:(h + 1) * Dhp] for h in range(H)], axis=0)
    k3 = jnp.stack([k[:, h * Dhp:(h + 1) * Dhp] for h in range(H)], axis=0)
    v3 = jnp.stack([v[:, h * Dhp:(h + 1) * Dhp] for h in range(H)], axis=0)
    s = jnp.einsum('hqe,hke->hqk', q3, k3,
                   preferred_element_type=jnp.float32) * scale      # (H, S, S) f32
    s = s - jnp.max(s, axis=-1, keepdims=True)
    p = jnp.exp(s)
    p = p * pl.reciprocal(jnp.sum(p, axis=-1, keepdims=True), approx=True)
    ctx = jnp.einsum('hqk,hke->hqe', p.astype(jnp.bfloat16), v3,
                     preferred_element_type=jnp.float32)            # (H, S, Dhp) f32
    ctx2 = jnp.concatenate([ctx[h] for h in range(H)], axis=-1)     # (S, Dp) concat-heads
    attn = jnp.dot(ctx2.astype(jnp.bfloat16), w_all[:, 3 * Dp:4 * Dp],
                   preferred_element_type=jnp.float32) + b_o        # (S, Dp) f32
    x = xn + attn                                    # dropout disabled (p = 0)

    # ---- MLP: LayerNorm2 -> Linear -> ReLU -> Linear, residual add ----
    h = _layernorm(x, ln2_g, ln2_b, inv_d).astype(jnp.bfloat16)
    m = jnp.dot(h, w_all[:, 4 * Dp:4 * Dp + Fp],
                preferred_element_type=jnp.float32) + b_1           # (S, Fp)
    m = jnp.maximum(m, 0.0).astype(jnp.bfloat16)
    mlp = jnp.dot(m, w2, preferred_element_type=jnp.float32) + b_2
    x = x + mlp
    x_scr[...] = x

    # ---- fused output projection at the last layer (single HBM write of logits) ----
    @pl.when(layer == num_layers - 1)
    def _():
        logits = jnp.dot(x.astype(jnp.bfloat16), wout_ref[...],
                         preferred_element_type=jnp.float32) + bout_ref[...]
        logits_ref[0] = logits


# ------------------------------ Python wrappers -------------------------------


def fused_forward(x_pad, packed, *, num_heads, num_layers, d_real, dh_real):
    B, S, Dp = x_pad.shape
    wslab, w2slab, vslab = packed['wslab'], packed['w2slab'], packed['vslab']
    w_out, b_out = packed['w_out'], packed['b_out']
    Fp = w2slab.shape[1]
    Vp = w_out.shape[1]
    NV, C = vslab.shape[1], vslab.shape[2]
    kernel = functools.partial(fused_transformer_kernel, num_heads=num_heads,
                               d_real=d_real, dh_real=dh_real, dp=Dp, fp=Fp)
    return pl.pallas_call(
        kernel,
        out_shape=jax.ShapeDtypeStruct((B, S, Vp), jnp.float32),
        grid=(B, num_layers),
        in_specs=[
            pl.BlockSpec((1, S, Dp), lambda b, l: (b, 0, 0)),               # x (per batch)
            pl.BlockSpec((1, Dp, wslab.shape[2]), lambda b, l: (l, 0, 0)),  # weight slab
            pl.BlockSpec((1, Fp, Dp), lambda b, l: (l, 0, 0)),              # W2 slab
            pl.BlockSpec((1, NV, C), lambda b, l: (l, 0, 0)),               # LN/bias slab
            pl.BlockSpec((Dp, Vp), lambda b, l: (0, 0)),                    # W_out (const)
            pl.BlockSpec((1, Vp), lambda b, l: (0, 0)),                     # b_out (const)
        ],
        out_specs=pl.BlockSpec((1, S, Vp), lambda b, l: (b, 0, 0)),
        scratch_shapes=[pltpu.VMEM((S, Dp), jnp.float32)],
        compiler_params=pltpu.CompilerParams(
            dimension_semantics=("parallel", "arbitrary")),
    )(x_pad, wslab, w2slab, vslab, w_out, b_out)


def transformer_forward(ids, packed, *, num_heads, num_layers, max_seq_len):
    """Equivalent of Transformer.forward(ids) with get_attn=False, mask=None."""
    B, S = ids.shape
    dims = packed['dims']
    # embedding gather + absolute positional encoding (data-dependent gather -> plain JAX)
    x = jnp.take(packed['embed'], ids, axis=0) + packed['pos'][None, :S, :]  # (B,S,Dp) f32
    logits_pad = fused_forward(x, packed, num_heads=num_heads, num_layers=num_layers,
                               d_real=dims['D'], dh_real=dims['Dh'])
    logits = logits_pad[..., :dims['V']]
    # get_attn=False -> attn_map == -1 (not a tensor) -> atten_maps stay zeros
    atten_maps = {l: jnp.zeros((num_heads, max_seq_len, max_seq_len), jnp.float32)
                  for l in range(num_layers)}
    return logits, atten_maps


# ----------------------------- parameter handling ------------------------------


def init_params(key, *, vocab_size, emb_dim, ff_dim, num_layers, num_heads,
                max_seq_len):
    """Logical (unpadded) parameters; weight matrices stored as (in, out) = W_pytorch.T.
    Weights are rounded to the bf16 grid (kept f32) so the kernel's bf16 copies and the
    f32 reference share identical values."""
    D, F, V = emb_dim, ff_dim, vocab_size
    keys = iter(jax.random.split(key, 4 + 12 * num_layers))

    def q8(w):
        return w.astype(jnp.bfloat16).astype(jnp.float32)

    def lin_w(k, fan_in, shape):
        return q8(jax.random.normal(k, shape, jnp.float32) / math.sqrt(fan_in))

    def lin_b(k, fan_in, n):
        bound = 1.0 / math.sqrt(fan_in)
        return q8(jax.random.uniform(k, (n,), jnp.float32, -bound, bound))

    embed = jax.random.normal(next(keys), (V, D), jnp.float32) * 0.02
    pos = jax.random.normal(next(keys), (max_seq_len, D), jnp.float32) * 0.02
    w_out = lin_w(next(keys), D, (D, V))
    b_out = lin_b(next(keys), D, V)

    layers = []
    for _ in range(num_layers):
        layers.append(dict(
            ln1_g=jnp.ones((D,), jnp.float32), ln1_b=jnp.zeros((D,), jnp.float32),
            wq=lin_w(next(keys), D, (D, D)), bq=lin_b(next(keys), D, D),
            wk=lin_w(next(keys), D, (D, D)), bk=lin_b(next(keys), D, D),
            wv=lin_w(next(keys), D, (D, D)), bv=lin_b(next(keys), D, D),
            wo=lin_w(next(keys), D, (D, D)), bo=lin_b(next(keys), D, D),
            ln2_g=jnp.ones((D,), jnp.float32), ln2_b=jnp.zeros((D,), jnp.float32),
            w1=lin_w(next(keys), D, (D, F)), b1=lin_b(next(keys), D, F),
            w2=lin_w(next(keys), F, (F, D)), b2=lin_b(next(keys), F, D),
        ))
    return dict(embed=embed, pos=pos, w_out=w_out, b_out=b_out, layers=layers)


def pack_params(params, *, num_heads):
    """Pad every parameter to lane-dense (multiples of 128) shapes with ZERO padding and
    pack the 16 per-layer tensors into 3 layer-stacked slabs."""
    V, D = params['embed'].shape
    F = params['layers'][0]['w1'].shape[1]
    Vocab = params['w_out'].shape[1]
    H = num_heads
    Dh = D // H
    Dp = _round_up(D, LANE)
    Fp = _round_up(F, LANE)
    Vp = _round_up(Vocab, LANE)
    assert Dp % H == 0
    Dhp = Dp // H
    C = max(Dp, Fp)

    def pad2(w, r, c):
        return jnp.pad(w, ((0, r - w.shape[0]), (0, c - w.shape[1])))

    def padv(b, c):
        return jnp.pad(b, (0, c - b.shape[0]))

    def head_cols(w):                         # (D, D) -> (Dp, Dp), head-strided columns
        out = jnp.zeros((Dp, Dp), w.dtype)
        wh = w.reshape(D, H, Dh)
        for h in range(H):
            out = out.at[:D, h * Dhp:h * Dhp + Dh].set(wh[:, h, :])
        return out

    def head_rows(w):                         # (D, D) -> (Dp, Dp), head-strided rows
        out = jnp.zeros((Dp, Dp), w.dtype)
        wh = w.reshape(H, Dh, D)
        for h in range(H):
            out = out.at[h * Dhp:h * Dhp + Dh, :D].set(wh[h])
        return out

    def head_vec(b):                          # (D,) -> (Dp,), head-strided
        out = jnp.zeros((Dp,), b.dtype)
        bh = b.reshape(H, Dh)
        for h in range(H):
            out = out.at[h * Dhp:h * Dhp + Dh].set(bh[h])
        return out

    wslabs, w2slabs, vslabs = [], [], []
    for lyr in params['layers']:
        wslab = jnp.concatenate(
            [head_cols(lyr['wq']), head_cols(lyr['wk']), head_cols(lyr['wv']),
             head_rows(lyr['wo']), pad2(lyr['w1'], Dp, Fp)],
            axis=1).astype(jnp.bfloat16)                      # (Dp, 4*Dp + Fp)
        w2slab = pad2(lyr['w2'], Fp, Dp).astype(jnp.bfloat16)  # (Fp, Dp)
        vslab = jnp.stack([
            padv(lyr['ln1_g'], C), padv(lyr['ln1_b'], C),
            padv(head_vec(lyr['bq']), C), padv(head_vec(lyr['bk']), C),
            padv(head_vec(lyr['bv']), C), padv(lyr['bo'], C),
            padv(lyr['ln2_g'], C), padv(lyr['ln2_b'], C),
            padv(lyr['b1'], C), padv(lyr['b2'], C)], axis=0)   # (10, C) f32
        wslabs.append(wslab)
        w2slabs.append(w2slab)
        vslabs.append(vslab)

    return dict(
        embed=pad2(params['embed'], V, Dp),
        pos=pad2(params['pos'], params['pos'].shape[0], Dp),
        w_out=pad2(params['w_out'], Dp, Vp).astype(jnp.bfloat16),
        b_out=padv(params['b_out'], Vp)[None, :],
        wslab=jnp.stack(wslabs), w2slab=jnp.stack(w2slabs), vslab=jnp.stack(vslabs),
        dims=dict(D=D, F=F, V=Vocab, Dp=Dp, Fp=Fp, Vp=Vp, Dh=Dh))


# ------------------------------- pure-JAX reference -----------------------------


def _layernorm_ref(x, g, b, eps=1e-5):
    mu = jnp.mean(x, axis=-1, keepdims=True)
    var = jnp.mean((x - mu) ** 2, axis=-1, keepdims=True)
    return (x - mu) / jnp.sqrt(var + eps) * g + b


def transformer_reference(ids, params, *, num_heads):
    """f32 reference with the same semantics as the PyTorch module (dropout=0, mask=None)."""
    x = params['embed'][ids] + params['pos'][None, :ids.shape[1], :]
    B, S, D = x.shape
    H = num_heads
    Dh = D // H
    for lyr in params['layers']:
        x = _layernorm_ref(x, lyr['ln1_g'], lyr['ln1_b'])
        q = (x @ lyr['wq'] + lyr['bq']).reshape(B, S, H, Dh)
        k = (x @ lyr['wk'] + lyr['bk']).reshape(B, S, H, Dh)
        v = (x @ lyr['wv'] + lyr['bv']).reshape(B, S, H, Dh)
        s = jnp.einsum('bqhe,bkhe->bhqk', q, k) / math.sqrt(Dh)
        p = jax.nn.softmax(s, axis=-1)
        ctx = jnp.einsum('bhqk,bkhe->bqhe', p, v).reshape(B, S, D)
        x = x + ctx @ lyr['wo'] + lyr['bo']
        h = _layernorm_ref(x, lyr['ln2_g'], lyr['ln2_b'])
        x = x + jnp.maximum(h @ lyr['w1'] + lyr['b1'], 0.0) @ lyr['w2'] + lyr['b2']
    return x @ params['w_out'] + params['b_out']


# --------------------------------------- main -----------------------------------


if __name__ == "__main__":
    VOCAB = 32
    EMB_DIM = 32
    FF_DIM = 64
    NUM_LAYERS = 2
    NUM_HEADS = 4
    MAX_SEQ_LEN = 8
    BATCH = 2
    SEQ = 8

    key = jax.random.PRNGKey(0)
    k_param, k_ids = jax.random.split(key)
    params = init_params(k_param, vocab_size=VOCAB, emb_dim=EMB_DIM, ff_dim=FF_DIM,
                         num_layers=NUM_LAYERS, num_heads=NUM_HEADS,
                         max_seq_len=MAX_SEQ_LEN)
    packed = pack_params(params, num_heads=NUM_HEADS)

    ids = jax.random.randint(k_ids, (BATCH, SEQ), 0, VOCAB, dtype=jnp.int32)

    logits, atten_maps = transformer_forward(
        ids, packed, num_heads=NUM_HEADS, num_layers=NUM_LAYERS,
        max_seq_len=MAX_SEQ_LEN)
    jax.block_until_ready(logits)

    assert logits.shape == (BATCH, SEQ, VOCAB), logits.shape
    assert bool(jnp.all(jnp.isfinite(logits)))

    # correctness vs a pure-JAX f32 reference (same bf16-rounded weight values; loose
    # tolerance accounts for bf16 matmul inputs + approx softmax reciprocal)
    ref = transformer_reference(ids, params, num_heads=NUM_HEADS)
    np.testing.assert_allclose(np.asarray(logits), np.asarray(ref),
                               rtol=5e-2, atol=5e-2)

    print("KERNEL_OK")
</pallas_src>

<mosaic_0001>
module attributes {stable_mosaic.version = 11 : i64} {
  func.func @fused_transformer_kernel(%arg0: i32, %arg1: i32, %arg2: memref<1x8x128xf32, #tpu.memory_space<vmem>>, %arg3: memref<1x128x640xbf16, #tpu.memory_space<vmem>>, %arg4: memref<1x128x128xbf16, #tpu.memory_space<vmem>>, %arg5: memref<1x10x128xf32, #tpu.memory_space<vmem>>, %arg6: memref<128x128xbf16, #tpu.memory_space<vmem>>, %arg7: memref<1x128xf32, #tpu.memory_space<vmem>>, %arg8: memref<1x8x128xf32, #tpu.memory_space<vmem>>, %arg9: memref<8x128xf32, #tpu.memory_space<vmem>>) attributes {dimension_semantics = [#tpu.dimension_semantics<parallel>, #tpu.dimension_semantics<arbitrary>], iteration_bounds = array<i64: 2, 2>, scalar_prefetch = 0 : i64, scratch_operands = 1 : i64, tpu.core_type = #tpu.core_type<tc>, window_params = [{transform_indices = @transform_0, window_bounds = array<i64: 1, 8, 128>}, {transform_indices = @transform_1, window_bounds = array<i64: 1, 128, 640>}, {transform_indices = @transform_2, window_bounds = array<i64: 1, 128, 128>}, {transform_indices = @transform_3, window_bounds = array<i64: 1, 10, 128>}, {pipeline_mode = #tpu.pipeline_mode<synchronous>, transform_indices = @transform_4, window_bounds = array<i64: 128, 128>}, {pipeline_mode = #tpu.pipeline_mode<synchronous>, transform_indices = @transform_5, window_bounds = array<i64: 1, 128>}, {transform_indices = @transform_6, window_bounds = array<i64: 1, 8, 128>}]} {
    %c0_i32 = arith.constant 0 : i32
    %0 = arith.cmpi eq, %arg1, %c0_i32 : i32
    %1 = arith.extui %0 : i1 to i32
    %c0_i32_0 = arith.constant 0 : i32
    %2 = arith.cmpi ne, %1, %c0_i32_0 : i32
    scf.if %2 {
      %c0_33 = arith.constant 0 : index
      %c0_34 = arith.constant 0 : index
      %c0_35 = arith.constant 0 : index
      %152 = vector.load %arg2[%c0_33, %c0_34, %c0_35] : memref<1x8x128xf32, #tpu.memory_space<vmem>>, vector<1x8x128xf32>
      %153 = vector.shape_cast %152 : vector<1x8x128xf32> to vector<8x128xf32>
      %c0_36 = arith.constant 0 : index
      %c0_37 = arith.constant 0 : index
      %154 = vector.load %arg9[%c0_36, %c0_37] : memref<8x128xf32, #tpu.memory_space<vmem>>, vector<8x128xf32>
      tpu.vector_store %arg9[%c0_36, %c0_37], %153 {strides = array<i32>} : memref<8x128xf32, #tpu.memory_space<vmem>>, vector<8x128xf32>,
    } else {
    }
    %c0 = arith.constant 0 : index
    %c0_1 = arith.constant 0 : index
    %3 = vector.load %arg9[%c0, %c0_1] : memref<8x128xf32, #tpu.memory_space<vmem>>, vector<8x128xf32>
    %c0_2 = arith.constant 0 : index
    %c0_3 = arith.constant 0 : index
    %c0_4 = arith.constant 0 : index
    %4 = vector.load %arg3[%c0_2, %c0_3, %c0_4] : memref<1x128x640xbf16, #tpu.memory_space<vmem>>, vector<1x128x640xbf16>
    %5 = vector.shape_cast %4 : vector<1x128x640xbf16> to vector<128x640xbf16>
    %c0_5 = arith.constant 0 : index
    %c0_6 = arith.constant 0 : index
    %c0_7 = arith.constant 0 : index
    %6 = vector.load %arg4[%c0_5, %c0_6, %c0_7] : memref<1x128x128xbf16, #tpu.memory_space<vmem>>, vector<1x128x128xbf16>
    %7 = vector.shape_cast %6 : vector<1x128x128xbf16> to vector<128x128xbf16>
    %c0_8 = arith.constant 0 : index
    %c0_9 = arith.constant 0 : index
    %c0_10 = arith.constant 0 : index
    %8 = vector.load %arg5[%c0_8, %c0_9, %c0_10] : memref<1x10x128xf32, #tpu.memory_space<vmem>>, vector<1x10x128xf32>
    %9 = vector.shape_cast %8 : vector<1x10x128xf32> to vector<10x128xf32>
    %10 = vector.extract_strided_slice %9 {offsets = [0, 0], sizes = [1, 128], strides = [1, 1]} : vector<10x128xf32> to vector<1x128xf32>
    %11 = vector.extract_strided_slice %9 {offsets = [1, 0], sizes = [1, 128], strides = [1, 1]} : vector<10x128xf32> to vector<1x128xf32>
    %12 = vector.extract_strided_slice %9 {offsets = [2, 0], sizes = [1, 128], strides = [1, 1]} : vector<10x128xf32> to vector<1x128xf32>
    %13 = vector.extract_strided_slice %9 {offsets = [3, 0], sizes = [1, 128], strides = [1, 1]} : vector<10x128xf32> to vector<1x128xf32>
    %14 = vector.extract_strided_slice %9 {offsets = [4, 0], sizes = [1, 128], strides = [1, 1]} : vector<10x128xf32> to vector<1x128xf32>
    %15 = vector.extract_strided_slice %9 {offsets = [5, 0], sizes = [1, 128], strides = [1, 1]} : vector<10x128xf32> to vector<1x128xf32>
    %16 = vector.extract_strided_slice %9 {offsets = [6, 0], sizes = [1, 128], strides = [1, 1]} : vector<10x128xf32> to vector<1x128xf32>
    %17 = vector.extract_strided_slice %9 {offsets = [7, 0], sizes = [1, 128], strides = [1, 1]} : vector<10x128xf32> to vector<1x128xf32>
    %18 = vector.extract_strided_slice %9 {offsets = [8, 0], sizes = [1, 128], strides = [1, 1]} : vector<10x128xf32> to vector<1x128xf32>
    %19 = vector.extract_strided_slice %9 {offsets = [9, 0], sizes = [1, 128], strides = [1, 1]} : vector<10x128xf32> to vector<1x128xf32>
    %cst = arith.constant dense<0.000000e+00> : vector<8xf32>
    %20 = vector.multi_reduction <add>, %3, %cst [1] : vector<8x128xf32> to vector<8xf32>
    %21 = vector.shape_cast %20 : vector<8xf32> to vector<8x1xf32>
    %cst_11 = arith.constant 3.125000e-02 : f32
    %22 = vector.broadcast %cst_11 : f32 to vector<8x1xf32>
    %23 = arith.mulf %21, %22 : vector<8x1xf32>
    %24 = arith.mulf %3, %3 : vector<8x128xf32>
    %cst_12 = arith.constant dense<0.000000e+00> : vector<8xf32>
    %25 = vector.multi_reduction <add>, %24, %cst_12 [1] : vector<8x128xf32> to vector<8xf32>
    %26 = vector.shape_cast %25 : vector<8xf32> to vector<8x1xf32>
    %cst_13 = arith.constant 3.125000e-02 : f32
    %27 = vector.broadcast %cst_13 : f32 to vector<8x1xf32>
    %28 = arith.mulf %26, %27 : vector<8x1xf32>
    %29 = arith.mulf %23, %23 : vector<8x1xf32>
    %30 = arith.subf %28, %29 : vector<8x1xf32>
    %31 = vector.broadcast %23 : vector<8x1xf32> to vector<8x128xf32>
    %32 = arith.subf %3, %31 : vector<8x128xf32>
    %cst_14 = arith.constant 9.99999974E-6 : f32
    %33 = vector.broadcast %cst_14 : f32 to vector<8x1xf32>
    %34 = arith.addf %30, %33 : vector<8x1xf32>
    %35 = math.rsqrt %34 : vector<8x1xf32>
    %36 = vector.broadcast %35 : vector<8x1xf32> to vector<8x128xf32>
    %37 = arith.mulf %32, %36 : vector<8x128xf32>
    %38 = vector.broadcast %10 : vector<1x128xf32> to vector<8x128xf32>
    %39 = arith.mulf %37, %38 : vector<8x128xf32>
    %40 = vector.broadcast %11 : vector<1x128xf32> to vector<8x128xf32>
    %41 = arith.addf %39, %40 : vector<8x128xf32>
    %42 = arith.truncf %41 : vector<8x128xf32> to vector<8x128xbf16>
    %43 = vector.extract_strided_slice %5 {offsets = [0, 0], sizes = [128, 384], strides = [1, 1]} : vector<128x640xbf16> to vector<128x384xbf16>
    %cst_15 = arith.constant dense<0.000000e+00> : vector<8x384xf32>
    %44 = tpu.matmul %42, %43, %cst_15 {dimension_numbers = #tpu.dot_dimension_numbers<[1], [0], [0], [1], [0, 0, 1, 1], [], []>} : vector<8x128xbf16>, vector<128x384xbf16>, vector<8x384xf32> -> vector<8x384xf32>
    %45 = vector.extract_strided_slice %44 {offsets = [0, 0], sizes = [8, 128], strides = [1, 1]} : vector<8x384xf32> to vector<8x128xf32>
    %46 = vector.broadcast %12 : vector<1x128xf32> to vector<8x128xf32>
    %47 = arith.addf %45, %46 : vector<8x128xf32>
    %48 = arith.truncf %47 : vector<8x128xf32> to vector<8x128xbf16>
    %49 = vector.extract_strided_slice %44 {offsets = [0, 128], sizes = [8, 128], strides = [1, 1]} : vector<8x384xf32> to vector<8x128xf32>
    %50 = vector.broadcast %13 : vector<1x128xf32> to vector<8x128xf32>
    %51 = arith.addf %49, %50 : vector<8x128xf32>
    %52 = arith.truncf %51 : vector<8x128xf32> to vector<8x128xbf16>
    %53 = vector.extract_strided_slice %44 {offsets = [0, 256], sizes = [8, 128], strides = [1, 1]} : vector<8x384xf32> to vector<8x128xf32>
    %54 = vector.broadcast %14 : vector<1x128xf32> to vector<8x128xf32>
    %55 = arith.addf %53, %54 : vector<8x128xf32>
    %56 = arith.truncf %55 : vector<8x128xf32> to vector<8x128xbf16>
    %57 = vector.extract_strided_slice %48 {offsets = [0, 0], sizes = [8, 32], strides = [1, 1]} : vector<8x128xbf16> to vector<8x32xbf16>
    %58 = vector.extract_strided_slice %48 {offsets = [0, 32], sizes = [8, 32], strides = [1, 1]} : vector<8x128xbf16> to vector<8x32xbf16>
    %59 = vector.extract_strided_slice %48 {offsets = [0, 64], sizes = [8, 32], strides = [1, 1]} : vector<8x128xbf16> to vector<8x32xbf16>
    %60 = vector.extract_strided_slice %48 {offsets = [0, 96], sizes = [8, 32], strides = [1, 1]} : vector<8x128xbf16> to vector<8x32xbf16>
    %61 = vector.shape_cast %57 : vector<8x32xbf16> to vector<1x8x32xbf16>
    %62 = vector.shape_cast %58 : vector<8x32xbf16> to vector<1x8x32xbf16>
    %63 = vector.shape_cast %59 : vector<8x32xbf16> to vector<1x8x32xbf16>
    %64 = vector.shape_cast %60 : vector<8x32xbf16> to vector<1x8x32xbf16>
    %65 = tpu.concatenate %61, %62, %63, %64 in 0 : vector<1x8x32xbf16>, vector<1x8x32xbf16>, vector<1x8x32xbf16>, vector<1x8x32xbf16> -> vector<4x8x32xbf16>
    %66 = vector.extract_strided_slice %52 {offsets = [0, 0], sizes = [8, 32], strides = [1, 1]} : vector<8x128xbf16> to vector<8x32xbf16>
    %67 = vector.extract_strided_slice %52 {offsets = [0, 32], sizes = [8, 32], strides = [1, 1]} : vector<8x128xbf16> to vector<8x32xbf16>
    %68 = vector.extract_strided_slice %52 {offsets = [0, 64], sizes = [8, 32], strides = [1, 1]} : vector<8x128xbf16> to vector<8x32xbf16>
    %69 = vector.extract_strided_slice %52 {offsets = [0, 96], sizes = [8, 32], strides = [1, 1]} : vector<8x128xbf16> to vector<8x32xbf16>
    %70 = vector.shape_cast %66 : vector<8x32xbf16> to vector<1x8x32xbf16>
    %71 = vector.shape_cast %67 : vector<8x32xbf16> to vector<1x8x32xbf16>
    %72 = vector.shape_cast %68 : vector<8x32xbf16> to vector<1x8x32xbf16>
    %73 = vector.shape_cast %69 : vector<8x32xbf16> to vector<1x8x32xbf16>
    %74 = tpu.concatenate %70, %71, %72, %73 in 0 : vector<1x8x32xbf16>, vector<1x8x32xbf16>, vector<1x8x32xbf16>, vector<1x8x32xbf16> -> vector<4x8x32xbf16>
    %75 = vector.extract_strided_slice %56 {offsets = [0, 0], sizes = [8, 32], strides = [1, 1]} : vector<8x128xbf16> to vector<8x32xbf16>
    %76 = vector.extract_strided_slice %56 {offsets = [0, 32], sizes = [8, 32], strides = [1, 1]} : vector<8x128xbf16> to vector<8x32xbf16>
    %77 = vector.extract_strided_slice %56 {offsets = [0, 64], sizes = [8, 32], strides = [1, 1]} : vector<8x128xbf16> to vector<8x32xbf16>
    %78 = vector.extract_strided_slice %56 {offsets = [0, 96], sizes = [8, 32], strides = [1, 1]} : vector<8x128xbf16> to vector<8x32xbf16>
    %79 = vector.shape_cast %75 : vector<8x32xbf16> to vector<1x8x32xbf16>
    %80 = vector.shape_cast %76 : vector<8x32xbf16> to vector<1x8x32xbf16>
    %81 = vector.shape_cast %77 : vector<8x32xbf16> to vector<1x8x32xbf16>
    %82 = vector.shape_cast %78 : vector<8x32xbf16> to vector<1x8x32xbf16>
    %83 = tpu.concatenate %79, %80, %81, %82 in 0 : vector<1x8x32xbf16>, vector<1x8x32xbf16>, vector<1x8x32xbf16>, vector<1x8x32xbf16> -> vector<4x8x32xbf16>
    "tpu.trace_start"() <{level = 10 : i32, message = "hqe,hke->hqk"}> : () -> ()
    %cst_16 = arith.constant dense<0.000000e+00> : vector<4x8x8xf32>
    %84 = tpu.matmul %65, %74, %cst_16 {dimension_numbers = #tpu.dot_dimension_numbers<[2], [2], [1], [1], [0, 0, 0, 1, 1, 1], [0], [0]>} : vector<4x8x32xbf16>, vector<4x8x32xbf16>, vector<4x8x8xf32> -> vector<4x8x8xf32>
    "tpu.trace_stop"() : () -> ()
    %cst_17 = arith.constant 0.353553385 : f32
    %85 = vector.broadcast %cst_17 : f32 to vector<4x8x8xf32>
    %86 = arith.mulf %84, %85 : vector<4x8x8xf32>
    %cst_18 = arith.constant dense<0xFF800000> : vector<4x8xf32>
    %87 = vector.multi_reduction <maximumf>, %86, %cst_18 [2] : vector<4x8x8xf32> to vector<4x8xf32>
    %88 = vector.shape_cast %87 : vector<4x8xf32> to vector<4x8x1xf32>
    %89 = vector.broadcast %88 : vector<4x8x1xf32> to vector<4x8x8xf32>
    %90 = arith.subf %86, %89 : vector<4x8x8xf32>
    %91 = math.exp %90 : vector<4x8x8xf32>
    %cst_19 = arith.constant dense<0.000000e+00> : vector<4x8xf32>
    %92 = vector.multi_reduction <add>, %91, %cst_19 [2] : vector<4x8x8xf32> to vector<4x8xf32>
    %93 = vector.shape_cast %92 : vector<4x8xf32> to vector<4x8x1xf32>
    %94 = tpu.reciprocal %93 {approx = true} : vector<4x8x1xf32> -> vector<4x8x1xf32>
    %95 = vector.broadcast %94 : vector<4x8x1xf32> to vector<4x8x8xf32>
    %96 = arith.mulf %91, %95 : vector<4x8x8xf32>
    %97 = arith.truncf %96 : vector<4x8x8xf32> to vector<4x8x8xbf16>
    "tpu.trace_start"() <{level = 10 : i32, message = "hqk,hke->hqe"}> : () -> ()
    %cst_20 = arith.constant dense<0.000000e+00> : vector<4x8x32xf32>
    %98 = tpu.matmul %97, %83, %cst_20 {dimension_numbers = #tpu.dot_dimension_numbers<[2], [1], [1], [2], [0, 0, 0, 1, 1, 2], [0], [0]>} : vector<4x8x8xbf16>, vector<4x8x32xbf16>, vector<4x8x32xf32> -> vector<4x8x32xf32>
    "tpu.trace_stop"() : () -> ()
    %99 = vector.extract_strided_slice %98 {offsets = [0, 0, 0], sizes = [1, 8, 32], strides = [1, 1, 1]} : vector<4x8x32xf32> to vector<1x8x32xf32>
    %100 = vector.shape_cast %99 : vector<1x8x32xf32> to vector<8x32xf32>
    %101 = vector.extract_strided_slice %98 {offsets = [1, 0, 0], sizes = [1, 8, 32], strides = [1, 1, 1]} : vector<4x8x32xf32> to vector<1x8x32xf32>
    %102 = vector.shape_cast %101 : vector<1x8x32xf32> to vector<8x32xf32>
    %103 = vector.extract_strided_slice %98 {offsets = [2, 0, 0], sizes = [1, 8, 32], strides = [1, 1, 1]} : vector<4x8x32xf32> to vector<1x8x32xf32>
    %104 = vector.shape_cast %103 : vector<1x8x32xf32> to vector<8x32xf32>
    %105 = vector.extract_strided_slice %98 {offsets = [3, 0, 0], sizes = [1, 8, 32], strides = [1, 1, 1]} : vector<4x8x32xf32> to vector<1x8x32xf32>
    %106 = vector.shape_cast %105 : vector<1x8x32xf32> to vector<8x32xf32>
    %107 = tpu.concatenate %100, %102, %104, %106 in 1 : vector<8x32xf32>, vector<8x32xf32>, vector<8x32xf32>, vector<8x32xf32> -> vector<8x128xf32>
    %108 = arith.truncf %107 : vector<8x128xf32> to vector<8x128xbf16>
    %109 = vector.extract_strided_slice %5 {offsets = [0, 384], sizes = [128, 128], strides = [1, 1]} : vector<128x640xbf16> to vector<128x128xbf16>
    %cst_21 = arith.constant dense<0.000000e+00> : vector<8x128xf32>
    %110 = tpu.matmul %108, %109, %cst_21 {dimension_numbers = #tpu.dot_dimension_numbers<[1], [0], [0], [1], [0, 0, 1, 1], [], []>} : vector<8x128xbf16>, vector<128x128xbf16>, vector<8x128xf32> -> vector<8x128xf32>
    %111 = vector.broadcast %15 : vector<1x128xf32> to vector<8x128xf32>
    %112 = arith.addf %110, %111 : vector<8x128xf32>
    %113 = arith.addf %41, %112 : vector<8x128xf32>
    %cst_22 = arith.constant dense<0.000000e+00> : vector<8xf32>
    %114 = vector.multi_reduction <add>, %113, %cst_22 [1] : vector<8x128xf32> to vector<8xf32>
    %115 = vector.shape_cast %114 : vector<8xf32> to vector<8x1xf32>
    %cst_23 = arith.constant 3.125000e-02 : f32
    %116 = vector.broadcast %cst_23 : f32 to vector<8x1xf32>
    %117 = arith.mulf %115, %116 : vector<8x1xf32>
    %118 = arith.mulf %113, %113 : vector<8x128xf32>
    %cst_24 = arith.constant dense<0.000000e+00> : vector<8xf32>
    %119 = vector.multi_reduction <add>, %118, %cst_24 [1] : vector<8x128xf32> to vector<8xf32>
    %120 = vector.shape_cast %119 : vector<8xf32> to vector<8x1xf32>
    %cst_25 = arith.constant 3.125000e-02 : f32
    %121 = vector.broadcast %cst_25 : f32 to vector<8x1xf32>
    %122 = arith.mulf %120, %121 : vector<8x1xf32>
    %123 = arith.mulf %117, %117 : vector<8x1xf32>
    %124 = arith.subf %122, %123 : vector<8x1xf32>
    %125 = vector.broadcast %117 : vector<8x1xf32> to vector<8x128xf32>
    %126 = arith.subf %113, %125 : vector<8x128xf32>
    %cst_26 = arith.constant 9.99999974E-6 : f32
    %127 = vector.broadcast %cst_26 : f32 to vector<8x1xf32>
    %128 = arith.addf %124, %127 : vector<8x1xf32>
    %129 = math.rsqrt %128 : vector<8x1xf32>
    %130 = vector.broadcast %129 : vector<8x1xf32> to vector<8x128xf32>
    %131 = arith.mulf %126, %130 : vector<8x128xf32>
    %132 = vector.broadcast %16 : vector<1x128xf32> to vector<8x128xf32>
    %133 = arith.mulf %131, %132 : vector<8x128xf32>
    %134 = vector.broadcast %17 : vector<1x128xf32> to vector<8x128xf32>
    %135 = arith.addf %133, %134 : vector<8x128xf32>
    %136 = arith.truncf %135 : vector<8x128xf32> to vector<8x128xbf16>
    %137 = vector.extract_strided_slice %5 {offsets = [0, 512], sizes = [128, 128], strides = [1, 1]} : vector<128x640xbf16> to vector<128x128xbf16>
    %cst_27 = arith.constant dense<0.000000e+00> : vector<8x128xf32>
    %138 = tpu.matmul %136, %137, %cst_27 {dimension_numbers = #tpu.dot_dimension_numbers<[1], [0], [0], [1], [0, 0, 1, 1], [], []>} : vector<8x128xbf16>, vector<128x128xbf16>, vector<8x128xf32> -> vector<8x128xf32>
    %139 = vector.broadcast %18 : vector<1x128xf32> to vector<8x128xf32>
    %140 = arith.addf %138, %139 : vector<8x128xf32>
    %cst_28 = arith.constant 0.000000e+00 : f32
    %141 = vector.broadcast %cst_28 : f32 to vector<8x128xf32>
    %142 = arith.maximumf %140, %141 : vector<8x128xf32>
    %143 = arith.truncf %142 : vector<8x128xf32> to vector<8x128xbf16>
    %cst_29 = arith.constant dense<0.000000e+00> : vector<8x128xf32>
    %144 = tpu.matmul %143, %7, %cst_29 {dimension_numbers = #tpu.dot_dimension_numbers<[1], [0], [0], [1], [0, 0, 1, 1], [], []>} : vector<8x128xbf16>, vector<128x128xbf16>, vector<8x128xf32> -> vector<8x128xf32>
    %145 = vector.broadcast %19 : vector<1x128xf32> to vector<8x128xf32>
    %146 = arith.addf %144, %145 : vector<8x128xf32>
    %147 = arith.addf %113, %146 : vector<8x128xf32>
    %c0_30 = arith.constant 0 : index
    %c0_31 = arith.constant 0 : index
    %148 = vector.load %arg9[%c0_30, %c0_31] : memref<8x128xf32, #tpu.memory_space<vmem>>, vector<8x128xf32>
    tpu.vector_store %arg9[%c0_30, %c0_31], %147 {strides = array<i32>} : memref<8x128xf32, #tpu.memory_space<vmem>>, vector<8x128xf32>,
    %c1_i32 = arith.constant 1 : i32
    %149 = arith.cmpi eq, %arg1, %c1_i32 : i32
    %150 = arith.extui %149 : i1 to i32
    %c0_i32_32 = arith.constant 0 : i32
    %151 = arith.cmpi ne, %150, %c0_i32_32 : i32
    scf.if %151 {
      %152 = arith.truncf %147 : vector<8x128xf32> to vector<8x128xbf16>
      %c0_33 = arith.constant 0 : index
      %c0_34 = arith.constant 0 : index
      %153 = vector.load %arg6[%c0_33, %c0_34] : memref<128x128xbf16, #tpu.memory_space<vmem>>, vector<128x128xbf16>
      %cst_35 = arith.constant dense<0.000000e+00> : vector<8x128xf32>
      %154 = tpu.matmul %152, %153, %cst_35 {dimension_numbers = #tpu.dot_dimension_numbers<[1], [0], [0], [1], [0, 0, 1, 1], [], []>} : vector<8x128xbf16>, vector<128x128xbf16>, vector<8x128xf32> -> vector<8x128xf32>
      %c0_36 = arith.constant 0 : index
      %c0_37 = arith.constant 0 : index
      %155 = vector.load %arg7[%c0_36, %c0_37] : memref<1x128xf32, #tpu.memory_space<vmem>>, vector<1x128xf32>
      %156 = vector.broadcast %155 : vector<1x128xf32> to vector<8x128xf32>
      %157 = arith.addf %154, %156 : vector<8x128xf32>
      %c0_38 = arith.constant 0 : index
      %c0_39 = arith.constant 0 : index
      %c0_40 = arith.constant 0 : index
      %158 = vector.load %arg8[%c0_38, %c0_39, %c0_40] : memref<1x8x128xf32, #tpu.memory_space<vmem>>, vector<1x8x128xf32>
      %159 = vector.shape_cast %158 : vector<1x8x128xf32> to vector<8x128xf32>
      %160 = vector.shape_cast %157 : vector<8x128xf32> to vector<1x8x128xf32>
      tpu.vector_store %arg8[%c0_38, %c0_39, %c0_40], %160 {strides = array<i32>} : memref<1x8x128xf32, #tpu.memory_space<vmem>>, vector<1x8x128xf32>,
    } else {
    }
    return
  }
  func.func @transform_0(%arg0: i32, %arg1: i32) -> (i32, i32, i32) {
    %c0_i32 = arith.constant 0 : i32
    %c0_i32_0 = arith.constant 0 : i32
    %c0_i32_1 = arith.constant 0 : i32
    return %arg0, %c0_i32, %c0_i32_0 : i32, i32, i32
  }
  func.func @transform_1(%arg0: i32, %arg1: i32) -> (i32, i32, i32) {
    %c0_i32 = arith.constant 0 : i32
    %c0_i32_0 = arith.constant 0 : i32
    %c0_i32_1 = arith.constant 0 : i32
    return %arg1, %c0_i32, %c0_i32_0 : i32, i32, i32
  }
  func.func @transform_2(%arg0: i32, %arg1: i32) -> (i32, i32, i32) {
    %c0_i32 = arith.constant 0 : i32
    %c0_i32_0 = arith.constant 0 : i32
    %c0_i32_1 = arith.constant 0 : i32
    return %arg1, %c0_i32, %c0_i32_0 : i32, i32, i32
  }
  func.func @transform_3(%arg0: i32, %arg1: i32) -> (i32, i32, i32) {
    %c0_i32 = arith.constant 0 : i32
    %c0_i32_0 = arith.constant 0 : i32
    %c0_i32_1 = arith.constant 0 : i32
    return %arg1, %c0_i32, %c0_i32_0 : i32, i32, i32
  }
  func.func @transform_4(%arg0: i32, %arg1: i32) -> (i32, i32) {
    %c0_i32 = arith.constant 0 : i32
    %c0_i32_0 = arith.constant 0 : i32
    %c0_i32_1 = arith.constant 0 : i32
    return %c0_i32, %c0_i32_0 : i32, i32
  }
  func.func @transform_5(%arg0: i32, %arg1: i32) -> (i32, i32) {
    %c0_i32 = arith.constant 0 : i32
    %c0_i32_0 = arith.constant 0 : i32
    %c0_i32_1 = arith.constant 0 : i32
    return %c0_i32, %c0_i32_0 : i32, i32
  }
  func.func @transform_6(%arg0: i32, %arg1: i32) -> (i32, i32, i32) {
    %c0_i32 = arith.constant 0 : i32
    %c0_i32_0 = arith.constant 0 : i32
    %c0_i32_1 = arith.constant 0 : i32
    return %arg0, %c0_i32, %c0_i32_0 : i32, i32, i32
  }
}

</mosaic_0001>

<llo_original>
// kernel: tpu_custom_call.1
$region0: #{tpu_custom_call.1}
  #allocation0 [shape = 'u32[]', space=smem, size = 0x4, offset = 0x4, fixed_abs, tag = 'smem constant byte address 0x4 - core index']
  #allocation1 [shape = 'u32[72,128]{1,0:T(1,128)}', space=vmem, size = 0x9000, scoped, tag = 'internal scratch']
  #allocation2 [shape = 'f32[8,128]{1,0:T(8,128)}', space=vmem, size = 0x1000, scoped, tag = 'scratch operand']
  %s0 = inlined_call_operand.vmem [shape: f32[2,8,128], index: 0, kind: input, shape index: {}]
  %s1 = inlined_call_operand.hbm [shape: bf16[2,128,640], index: 1, kind: input, shape index: {}]
  %s2 = inlined_call_operand.hbm [shape: bf16[2,128,128], index: 2, kind: input, shape index: {}]
  %s3 = inlined_call_operand.vmem [shape: f32[2,10,128], index: 3, kind: input, shape index: {}]
  %s4 = inlined_call_operand.hbm [shape: bf16[128,128], index: 4, kind: input, shape index: {}]
  %s5 = inlined_call_operand.vmem [shape: f32[1,128], index: 5, kind: input, shape index: {}]
  %s6 = inlined_call_operand.hbm [shape: f32[2,8,128], index: 6, kind: output, shape index: {}]
  %s7 = sld [smem:[#allocation0]]
  $region77: #{tpu_custom_call.1} parent=0
    _
  %s9 = ssub.s32 1, %s7
  %s10 = scalar_select 0, %s9, %s7
  $region1: #{tpu_custom_call.1} parent=0
    #allocation3 [shape = 'u8[327680]{0}', space=vmem, size = 0x50000, scoped, tag = 'input window, operand 1']
    #allocation4 [shape = 's32[2]{0}', space=sflag, size = 0x8, scoped, tag = 'scoped memory for tpu_custom_call.1']
    #allocation5 [shape = 's32[2]{0}', space=sflag, size = 0x8, scoped, tag = 'scoped memory for tpu_custom_call.1']
    #allocation6 [shape = 'u8[65536]{0}', space=vmem, size = 0x10000, scoped, tag = 'input window, operand 2']
    #allocation7 [shape = 's32[2]{0}', space=sflag, size = 0x8, scoped, tag = 'scoped memory for tpu_custom_call.1']
    #allocation8 [shape = 'u8[32768]{0}', space=vmem, size = 0x8000, scoped, tag = 'input window, operand 4, single buffered']
    #allocation9 [shape = 'u8[8192]{0}', space=vmem, size = 0x2000, scoped, tag = 'output window, operand 0']
    %11 = vsyncpa [#allocation4], 0
    %s12 = scalar_lea.sflag [#allocation4], 1
    %13 = vsyncpa %s12, 0
    %14 = vsyncpa [#allocation7], 0
    %s15 = scalar_lea.sflag [#allocation7], 1
    %16 = vsyncpa %s15, 0
    %17 = vsyncpa [#allocation5], 0
    %s18 = scalar_lea.sflag [#allocation5], 1
    %19 = vsyncpa %s18, 0
    loop: start=0, step=1, limit=6
    $region2: #{tpu_custom_call.1} parent=1 // loop_pre_header
      _
    $region3: #{tpu_custom_call.1} parent=1 // loop_header
      %s21 = sphi 0, %s25
      %p22 = scmp.ge.s32.totalorder %s21, 6
      %s28 = sphi 0, %s40
      %s29 = sphi 0, %s36
      %s30 = sphi 0, %s28
      %s31 = sphi 0, %s29
      %s32 = sphi 0, %s30
      %s33 = sphi 0, %s31
      %s43 = sphi 0, %s45
      %s46 = sphi 0, %s43
      %s47 = sphi 0, %s46
      %s63 = sphi 0, %s47
      %s69 = sphi 0, %s71
      %s72 = sphi 0, %s69
      %s73 = sphi 0, %s72
      %s89 = sphi 0, %s73
      %s95 = sphi 0, %s97
      %s98 = sphi 0, %s95
      %s99 = sphi 0, %s98
      %s115 = sphi 0, %s99
      %s121 = sphi 0, %s123
      %s124 = sphi 0, %s121
      %s125 = sphi 0, %s124
      %s141 = sphi 0, %s125
      %s145 = sphi 0, %s145
      %s147 = sphi 0, %s145
      %s148 = sphi 0, %s147
      %s162 = sphi 0, %s148
      %s166 = sphi 0, %s166
      %s168 = sphi 0, %s166
      %s169 = sphi 0, %s168
      %s183 = sphi 0, %s169
      %s189 = sphi 0, %s191
      %s192 = sphi 0, %s189
      %s193 = sphi 0, %s192
      %s209 = sphi 0, %s193
    $region4: #{tpu_custom_call.1} parent=1 // loop_header_branch
      %24 = sbr.rel (%p22) target = $region8
    $region5: #{tpu_custom_call.1} parent=1 // loop_body
      %s26 = ssub.s32 %s21, 1
      %s27 = ssub.s32 %s21, 2
      %s34 = sadd.s32 1, %s29
      %p35 = scmp.ge.s32.totalorder %s34, 2
      %s36 = scalar_select %p35, 0, %s34
      %s37 = sadd.s32 1, %s28
      %s38 = scalar_select %p35, %s37, %s28
      %p39 = scmp.ge.s32.totalorder %s38, 2
      %s40 = scalar_select %p39, 0, %s38
      %s41 = ssub.s32 %s28, %s40
      %p42 = scmp.eq.s32.totalorder %s41, 0
      %s44 = sadd.s32 %s43, 1
      %s45 = scalar_select %p42, %s43, %s44
      %p48 = pneg %p42
      %p49 = scmp.eq.s32.totalorder %s21, 3
      %p50 = por %p48, %p49
      %p51 = scmp.ne.s32.totalorder %s43, %s46
      %p52 = scmp.eq.s32.totalorder %s21, 0
      %p53 = por %p51, %p52
      %p54 = scmp.ne.s32.totalorder %s43, %s46
      %p55 = scmp.eq.s32.totalorder %s26, 3
      %p56 = por %p54, %p55
      %p57 = scmp.ne.s32.totalorder %s46, %s47
      %p58 = scmp.eq.s32.totalorder %s26, 0
      %p59 = por %p57, %p58
      %p60 = scmp.ne.s32.totalorder %s46, %s47
      %p61 = scmp.eq.s32.totalorder %s27, 3
      %p62 = por %p60, %p61
      %p64 = scmp.ne.s32.totalorder %s47, %s63
      %p65 = scmp.eq.s32.totalorder %s27, 0
      %p66 = por %p64, %p65
      %s67 = ssub.s32 %s29, %s36
      %p68 = scmp.eq.s32.totalorder %s67, 0
      %s70 = sadd.s32 %s69, 1
      %s71 = scalar_select %p68, %s69, %s70
      %p74 = pneg %p68
      %p75 = scmp.eq.s32.totalorder %s21, 3
      %p76 = por %p74, %p75
      %p77 = scmp.ne.s32.totalorder %s69, %s72
      %p78 = scmp.eq.s32.totalorder %s21, 0
      %p79 = por %p77, %p78
      %p80 = scmp.ne.s32.totalorder %s69, %s72
      %p81 = scmp.eq.s32.totalorder %s26, 3
      %p82 = por %p80, %p81
      %p83 = scmp.ne.s32.totalorder %s72, %s73
      %p84 = scmp.eq.s32.totalorder %s26, 0
      %p85 = por %p83, %p84
      %p86 = scmp.ne.s32.totalorder %s72, %s73
      %p87 = scmp.eq.s32.totalorder %s27, 3
      %p88 = por %p86, %p87
      %p90 = scmp.ne.s32.totalorder %s73, %s89
      %p91 = scmp.eq.s32.totalorder %s27, 0
      %p92 = por %p90, %p91
      %s93 = ssub.s32 %s29, %s36
      %p94 = scmp.eq.s32.totalorder %s93, 0
      %s96 = sadd.s32 %s95, 1
      %s97 = scalar_select %p94, %s95, %s96
      %p100 = pneg %p94
      %p101 = scmp.eq.s32.totalorder %s21, 3
      %p102 = por %p100, %p101
      %p103 = scmp.ne.s32.totalorder %s95, %s98
      %p104 = scmp.eq.s32.totalorder %s21, 0
      %p105 = por %p103, %p104
      %p106 = scmp.ne.s32.totalorder %s95, %s98
      %p107 = scmp.eq.s32.totalorder %s26, 3
      %p108 = por %p106, %p107
      %p109 = scmp.ne.s32.totalorder %s98, %s99
      %p110 = scmp.eq.s32.totalorder %s26, 0
      %p111 = por %p109, %p110
      %p112 = scmp.ne.s32.totalorder %s98, %s99
      %p113 = scmp.eq.s32.totalorder %s27, 3
      %p114 = por %p112, %p113
      %p116 = scmp.ne.s32.totalorder %s99, %s115
      %p117 = scmp.eq.s32.totalorder %s27, 0
      %p118 = por %p116, %p117
      %s119 = ssub.s32 %s29, %s36
      %p120 = scmp.eq.s32.totalorder %s119, 0
      %s122 = sadd.s32 %s121, 1
      %s123 = scalar_select %p120, %s121, %s122
      %p126 = pneg %p120
      %p127 = scmp.eq.s32.totalorder %s21, 3
      %p128 = por %p126, %p127
      %p129 = scmp.ne.s32.totalorder %s121, %s124
      %p130 = scmp.eq.s32.totalorder %s21, 0
      %p131 = por %p129, %p130
      %p132 = scmp.ne.s32.totalorder %s121, %s124
      %p133 = scmp.eq.s32.totalorder %s26, 3
      %p134 = por %p132, %p133
      %p135 = scmp.ne.s32.totalorder %s124, %s125
      %p136 = scmp.eq.s32.totalorder %s26, 0
      %p137 = por %p135, %p136
      %p138 = scmp.ne.s32.totalorder %s124, %s125
      %p139 = scmp.eq.s32.totalorder %s27, 3
      %p140 = por %p138, %p139
      %p142 = scmp.ne.s32.totalorder %s125, %s141
      %p143 = scmp.eq.s32.totalorder %s27, 0
      %p144 = por %p142, %p143
      %s146 = sadd.s32 %s145, 1
      %p149 = scmp.eq.s32.totalorder %s21, 3
      %p150 = scmp.ne.s32.totalorder %s145, %s147
      %p151 = scmp.eq.s32.totalorder %s21, 0
      %p152 = por %p150, %p151
      %p153 = scmp.ne.s32.totalorder %s145, %s147
      %p154 = scmp.eq.s32.totalorder %s26, 3
      %p155 = por %p153, %p154
      %p156 = scmp.ne.s32.totalorder %s147, %s148
      %p157 = scmp.eq.s32.totalorder %s26, 0
      %p158 = por %p156, %p157
      %p159 = scmp.ne.s32.totalorder %s147, %s148
      %p160 = scmp.eq.s32.totalorder %s27, 3
      %p161 = por %p159, %p160
      %p163 = scmp.ne.s32.totalorder %s148, %s162
      %p164 = scmp.eq.s32.totalorder %s27, 0
      %p165 = por %p163, %p164
      %s167 = sadd.s32 %s166, 1
      %p170 = scmp.eq.s32.totalorder %s21, 3
      %p171 = scmp.ne.s32.totalorder %s166, %s168
      %p172 = scmp.eq.s32.totalorder %s21, 0
      %p173 = por %p171, %p172
      %p174 = scmp.ne.s32.totalorder %s166, %s168
      %p175 = scmp.eq.s32.totalorder %s26, 3
      %p176 = por %p174, %p175
      %p177 = scmp.ne.s32.totalorder %s168, %s169
      %p178 = scmp.eq.s32.totalorder %s26, 0
      %p179 = por %p177, %p178
      %p180 = scmp.ne.s32.totalorder %s168, %s169
      %p181 = scmp.eq.s32.totalorder %s27, 3
      %p182 = por %p180, %p181
      %p184 = scmp.ne.s32.totalorder %s169, %s183
      %p185 = scmp.eq.s32.totalorder %s27, 0
      %p186 = por %p184, %p185
      %s187 = ssub.s32 %s28, %s40
      %p188 = scmp.eq.s32.totalorder %s187, 0
      %s190 = sadd.s32 %s189, 1
      %s191 = scalar_select %p188, %s189, %s190
      %p194 = pneg %p188
      %p195 = scmp.eq.s32.totalorder %s21, 3
      %p196 = por %p194, %p195
      %p197 = scmp.ne.s32.totalorder %s189, %s192
      %p198 = scmp.eq.s32.totalorder %s21, 0
      %p199 = por %p197, %p198
      %p200 = scmp.ne.s32.totalorder %s189, %s192
      %p201 = scmp.eq.s32.totalorder %s26, 3
      %p202 = por %p200, %p201
      %p203 = scmp.ne.s32.totalorder %s192, %s193
      %p204 = scmp.eq.s32.totalorder %s26, 0
      %p205 = por %p203, %p204
      %p206 = scmp.ne.s32.totalorder %s192, %s193
      %p207 = scmp.eq.s32.totalorder %s27, 3
      %p208 = por %p206, %p207
      %p210 = scmp.ne.s32.totalorder %s193, %s209
      %p211 = scmp.eq.s32.totalorder %s27, 0
      %p212 = por %p210, %p211
      %p213 = scmp.le.s32.totalorder 1, %s21
      %p214 = scmp.lt.s32.totalorder %s21, 5
      %p215 = pnand %p213, %p214
      %p216 = pneg %p215
      // Predicated region
      $region9: #{tpu_custom_call.1} parent=5 // pred_check
        _
      $region10: #{tpu_custom_call.1} parent=5 // pred_check_branch
        %218 = sbr.rel (%p215) target = $region12
      $region11: #{tpu_custom_call.1} parent=5 // pred_region
        %s219 = ssub.s32 %s21, 1
        // Predicated region
        $region13: #{tpu_custom_call.1} parent=11 // pred_check
          %p220 = pneg %p158
        $region14: #{tpu_custom_call.1} parent=11 // pred_check_branch
          %222 = sbr.rel (%p220) target = $region16
        $region15: #{tpu_custom_call.1} parent=11 // pred_region
          %224 = vsyncadd [#allocation7], 0
          %s225 = sshll.u32 %s4, 4
          %s226 = int_to_ptr.hbm [resolvable:$true] %s225
          %s227 = sshll.u32 [#allocation8], 4
          %s228 = int_to_ptr.vmem [resolvable:$true] %s227
          %233 = dma.hbm_to_vmem [thread:$0]  %s226, 1024, %s228, [#allocation7], 64, 64, 4
        $region16: #{tpu_custom_call.1} parent=11 // pred_fallthru
          _
        // Predicated region
        $region17: #{tpu_custom_call.1} parent=11 // pred_check
          %p234 = pneg %p179
        $region18: #{tpu_custom_call.1} parent=11 // pred_check_branch
          %236 = sbr.rel (%p234) target = $region20
        $region19: #{tpu_custom_call.1} parent=11 // pred_region
          _
        $region20: #{tpu_custom_call.1} parent=11 // pred_fallthru
          _
      $region12: #{tpu_custom_call.1} parent=5 // pred_fallthru
        _
      %p237 = scmp.lt.s32.totalorder %s21, 4
      // Predicated region
      $region21: #{tpu_custom_call.1} parent=5 // pred_check
        %p238 = pneg %p237
      $region22: #{tpu_custom_call.1} parent=5 // pred_check_branch
        %240 = sbr.rel (%p238) target = $region24
      $region23: #{tpu_custom_call.1} parent=5 // pred_region
        // Predicated region
        $region25: #{tpu_custom_call.1} parent=23 // pred_check
          %p241 = pneg %p53
        $region26: #{tpu_custom_call.1} parent=23 // pred_check_branch
          %243 = sbr.rel (%p241) target = $region28
        $region27: #{tpu_custom_call.1} parent=23 // pred_region
          %p244 = scmp.lt.s32.totalorder %s28, 1
          %s245 = scalar_select %p244, %s28, 1
          %s246 = smul.addr %s245, 8
          %s247 = scalar_lea.vmem %s0, %s246
        $region28: #{tpu_custom_call.1} parent=23 // pred_fallthru
          _
        // Predicated region
        $region29: #{tpu_custom_call.1} parent=23 // pred_check
          %p248 = pneg %p79
        $region30: #{tpu_custom_call.1} parent=23 // pred_check_branch
          %250 = sbr.rel (%p248) target = $region32
        $region31: #{tpu_custom_call.1} parent=23 // pred_region
          %s251 = sand.u32 %s69, 1
          %s252 = scalar_lea.sflag [#allocation4], %s251
          %s253 = sand.u32 %s69, 1
          %s254 = smul.addr %s253, 320
          %s255 = scalar_lea.vmem [#allocation3], %s254
          %257 = vsyncadd %s252, 0
          %s258 = smul.addr %s29, 80
          %s259 = smul.addr %s258, 4
          %s260 = scalar_lea.hbm %s1, %s259
          %s261 = sshll.u32 %s260, 4
          %s262 = int_to_ptr.hbm [resolvable:$true] %s261
          %s263 = sshll.u32 %s255, 4
          %s264 = int_to_ptr.vmem [resolvable:$true] %s263
          %269 = dma.hbm_to_vmem [thread:$0]  %s262, 5120, %s264, %s252, 320, 320, 20
        $region32: #{tpu_custom_call.1} parent=23 // pred_fallthru
          _
        // Predicated region
        $region33: #{tpu_custom_call.1} parent=23 // pred_check
          %p270 = pneg %p105
        $region34: #{tpu_custom_call.1} parent=23 // pred_check_branch
          %272 = sbr.rel (%p270) target = $region36
        $region35: #{tpu_custom_call.1} parent=23 // pred_region
          %s273 = sand.u32 %s21, 1
          %s274 = scalar_lea.sflag [#allocation7], %s273
          %s275 = sand.u32 %s95, 1
          %s276 = smul.addr %s275, 64
          %s277 = scalar_lea.vmem [#allocation6], %s276
          %279 = vsyncadd %s274, 0
          %s280 = smul.addr %s29, 16
          %s281 = smul.addr %s280, 4
          %s282 = scalar_lea.hbm %s2, %s281
          %s283 = sshll.u32 %s282, 4
          %s284 = int_to_ptr.hbm [resolvable:$true] %s283
          %s285 = sshll.u32 %s277, 4
          %s286 = int_to_ptr.vmem [resolvable:$true] %s285
          %291 = dma.hbm_to_vmem [thread:$0]  %s284, 1024, %s286, %s274, 64, 64, 4
        $region36: #{tpu_custom_call.1} parent=23 // pred_fallthru
          _
        // Predicated region
        $region37: #{tpu_custom_call.1} parent=23 // pred_check
          %p292 = pneg %p131
        $region38: #{tpu_custom_call.1} parent=23 // pred_check_branch
          %294 = sbr.rel (%p292) target = $region40
        $region39: #{tpu_custom_call.1} parent=23 // pred_region
          %p295 = scmp.lt.s32.totalorder %s29, 1
          %s296 = scalar_select %p295, %s29, 1
          %s297 = smul.addr %s296, 2
          %s298 = smul.addr %s297, 8
          %s299 = scalar_lea.vmem %s3, %s298
        $region40: #{tpu_custom_call.1} parent=23 // pred_fallthru
          _
      $region24: #{tpu_custom_call.1} parent=5 // pred_fallthru
        _
      %p300 = scmp.le.s32.totalorder 1, %s21
      %p301 = scmp.lt.s32.totalorder %s21, 5
      %p302 = pnand %p300, %p301
      %p303 = pneg %p302
      // Predicated region
      $region41: #{tpu_custom_call.1} parent=5 // pred_check
        _
      $region42: #{tpu_custom_call.1} parent=5 // pred_check_branch
        %305 = sbr.rel (%p302) target = $region44
      $region43: #{tpu_custom_call.1} parent=5 // pred_region
        %s306 = ssub.s32 %s21, 1
        %s307 = sand.u32 %s72, 1
        %s308 = scalar_lea.sflag [#allocation4], %s307
        %s309 = sand.u32 %s72, 1
        %s310 = smul.addr %s309, 320
        %s311 = scalar_lea.vmem [#allocation3], %s310
        // Predicated region
        $region45: #{tpu_custom_call.1} parent=43 // pred_check
          %p312 = pneg %p85
        $region46: #{tpu_custom_call.1} parent=43 // pred_check_branch
          %314 = sbr.rel (%p312) target = $region48
        $region47: #{tpu_custom_call.1} parent=43 // pred_region
          %316 = dma.done %s308, 5120
        $region48: #{tpu_custom_call.1} parent=43 // pred_fallthru
          _
        %s317 = sand.u32 %s26, 1
        %s318 = scalar_lea.sflag [#allocation7], %s317
        %s319 = sand.u32 %s98, 1
        %s320 = smul.addr %s319, 64
        %s321 = scalar_lea.vmem [#allocation6], %s320
        // Predicated region
        $region49: #{tpu_custom_call.1} parent=43 // pred_check
          %p322 = pneg %p111
        $region50: #{tpu_custom_call.1} parent=43 // pred_check_branch
          %324 = sbr.rel (%p322) target = $region52
        $region51: #{tpu_custom_call.1} parent=43 // pred_region
          %326 = dma.done %s318, 1024
        $region52: #{tpu_custom_call.1} parent=43 // pred_fallthru
          _
        // Predicated region
        $region53: #{tpu_custom_call.1} parent=43 // pred_check
          %p327 = pneg %p158
        $region54: #{tpu_custom_call.1} parent=43 // pred_check_branch
          %329 = sbr.rel (%p327) target = $region56
        $region55: #{tpu_custom_call.1} parent=43 // pred_region
          %331 = dma.done [#allocation7], 1024
        $region56: #{tpu_custom_call.1} parent=43 // pred_fallthru
          _
        %p332 = scmp.lt.s32.totalorder %s30, 1
        %s333 = scalar_select %p332, %s30, 1
        %s334 = smul.addr %s333, 8
        %s335 = scalar_lea.vmem %s0, %s334
        %p336 = pneg %p59
        %p337 = pneg %p56
        %s338 = sand.u32 %s72, 1
        %s339 = scalar_lea.sflag [#allocation4], %s338
        %s340 = sand.u32 %s72, 1
        %s341 = smul.addr %s340, 320
        %s342 = scalar_lea.vmem [#allocation3], %s341
        %p343 = pneg %p85
        %p344 = pneg %p82
        %s345 = sand.u32 %s26, 1
        %s346 = scalar_lea.sflag [#allocation7], %s345
        %s347 = sand.u32 %s98, 1
        %s348 = smul.addr %s347, 64
        %s349 = scalar_lea.vmem [#allocation6], %s348
        %p350 = pneg %p111
        %p351 = pneg %p108
        %p352 = scmp.lt.s32.totalorder %s31, 1
        %s353 = scalar_select %p352, %s31, 1
        %s354 = smul.addr %s353, 2
        %s355 = smul.addr %s354, 8
        %s356 = scalar_lea.vmem %s3, %s355
        %p357 = pneg %p137
        %p358 = pneg %p134
        %p359 = pneg %p158
        %p360 = pneg %p155
        %p361 = pneg %p179
        %p362 = pneg %p176
        %p363 = pneg %p205
        %p364 = pneg %p202
        %s365 = sand.u32 %s192, 1
        %s366 = scalar_lea.sflag [#allocation5], %s365
        %s367 = sand.u32 %s192, 1
        %s368 = smul.addr %s367, 8
        %s369 = scalar_lea.vmem [#allocation9], %s368
        %p370 = scmp.lt.s32.totalorder %s30, 1
        %s371 = scalar_select %p370, %s30, 1
        %s372 = smul.addr %s371, 8
        %s373 = scalar_lea.vmem %s0, %s372
        %p374 = scmp.lt.s32.totalorder %s31, 1
        %s375 = scalar_select %p374, %s31, 1
        %s376 = smul.addr %s375, 2
        %s377 = smul.addr %s376, 8
        %s378 = scalar_lea.vmem %s3, %s377
        %p380 = scmp.eq.s32.totalorder %s31, 0
        // Predicated region
        $region57: #{tpu_custom_call.1} parent=43 // pred_check
          %p381 = pneg %p380
        $region58: #{tpu_custom_call.1} parent=43 // pred_check_branch
          %383 = sbr.rel (%p381) target = $region60
        $region59: #{tpu_custom_call.1} parent=43 // pred_region
          %v384 = vld [vmem:[%s373] sm:$0xff]
          %385 = vst [vmem:[#allocation2] sm:$0xff] %v384
        $region60: #{tpu_custom_call.1} parent=43 // pred_fallthru
          _
        %v386 = vld [vmem:[#allocation2] sm:$0xff]
        %v387 = vld [vmem:[%s311] sm:$0xff]
        %v388 = vld [vmem:[%s311 + $0x8] sm:$0xff]
        %v389 = vld [vmem:[%s311 + $0x10] sm:$0xf]
        %v390 = vld [vmem:[%s311 + $0x14] sm:$0xff]
        %v391 = vld [vmem:[%s311 + $0x1c] sm:$0xff]
        %v392 = vld [vmem:[%s311 + $0x24] sm:$0xf]
        %v393 = vld [vmem:[%s311 + $0x28] sm:$0xff]
        %v394 = vld [vmem:[%s311 + $0x30] sm:$0xff]
        %v395 = vld [vmem:[%s311 + $0x38] sm:$0xf]
        %v396 = vld [vmem:[%s311 + $0x3c] sm:$0xff]
        %v397 = vld [vmem:[%s311 + $0x44] sm:$0xff]
        %v398 = vld [vmem:[%s311 + $0x4c] sm:$0xf]
        %v399 = vld [vmem:[%s311 + $0x50] sm:$0xff]
        %v400 = vld [vmem:[%s311 + $0x58] sm:$0xff]
        %v401 = vld [vmem:[%s311 + $0x60] sm:$0xf]
        %v402 = vld [vmem:[%s311 + $0x64] sm:$0xff]
        %v403 = vld [vmem:[%s311 + $0x6c] sm:$0xff]
        %v404 = vld [vmem:[%s311 + $0x74] sm:$0xf]
        %v405 = vld [vmem:[%s311 + $0x78] sm:$0xff]
        %v406 = vld [vmem:[%s311 + $0x80] sm:$0xff]
        %v407 = vld [vmem:[%s311 + $0x88] sm:$0xf]
        %v408 = vld [vmem:[%s311 + $0x8c] sm:$0xff]
        %v409 = vld [vmem:[%s311 + $0x94] sm:$0xff]
        %v410 = vld [vmem:[%s311 + $0x9c] sm:$0xf]
        %v411 = vld [vmem:[%s311 + $0xa0] sm:$0xff]
        %v412 = vld [vmem:[%s311 + $0xa8] sm:$0xff]
        %v413 = vld [vmem:[%s311 + $0xb0] sm:$0xf]
        %v414 = vld [vmem:[%s311 + $0xb4] sm:$0xff]
        %v415 = vld [vmem:[%s311 + $0xbc] sm:$0xff]
        %v416 = vld [vmem:[%s311 + $0xc4] sm:$0xf]
        %v417 = vld [vmem:[%s311 + $0xc8] sm:$0xff]
        %v418 = vld [vmem:[%s311 + $0xd0] sm:$0xff]
        %v419 = vld [vmem:[%s311 + $0xd8] sm:$0xf]
        %v420 = vld [vmem:[%s311 + $0xdc] sm:$0xff]
        %v421 = vld [vmem:[%s311 + $0xe4] sm:$0xff]
        %v422 = vld [vmem:[%s311 + $0xec] sm:$0xf]
        %v423 = vld [vmem:[%s311 + $0xf0] sm:$0xff]
        %v424 = vld [vmem:[%s311 + $0xf8] sm:$0xff]
        %v425 = vld [vmem:[%s311 + $0x100] sm:$0xf]
        %v426 = vld [vmem:[%s311 + $0x104] sm:$0xff]
        %v427 = vld [vmem:[%s311 + $0x10c] sm:$0xff]
        %v428 = vld [vmem:[%s311 + $0x114] sm:$0xf]
        %v429 = vld [vmem:[%s311 + $0x118] sm:$0xff]
        %v430 = vld [vmem:[%s311 + $0x120] sm:$0xff]
        %v431 = vld [vmem:[%s311 + $0x128] sm:$0xf]
        %v432 = vld [vmem:[%s311 + $0x12c] sm:$0xff]
        %v433 = vld [vmem:[%s311 + $0x134] sm:$0xff]
        %v434 = vld [vmem:[%s311 + $0x13c] sm:$0xf]
        %v435 = vld [vmem:[%s321] sm:$0xf]
        %v436 = vld [vmem:[%s321 + $0x4] sm:$0xf]
        %v437 = vld [vmem:[%s321 + $0x8] sm:$0xf]
        %v438 = vld [vmem:[%s321 + $0xc] sm:$0xf]
        %v439 = vld [vmem:[%s321 + $0x10] sm:$0xf]
        %v440 = vld [vmem:[%s321 + $0x14] sm:$0xf]
        %v441 = vld [vmem:[%s321 + $0x18] sm:$0xf]
        %v442 = vld [vmem:[%s321 + $0x1c] sm:$0xf]
        %v443 = vld [vmem:[%s321 + $0x20] sm:$0xf]
        %v444 = vld [vmem:[%s321 + $0x24] sm:$0xf]
        %v445 = vld [vmem:[%s321 + $0x28] sm:$0xf]
        %v446 = vld [vmem:[%s321 + $0x2c] sm:$0xf]
        %v447 = vld [vmem:[%s321 + $0x30] sm:$0xf]
        %v448 = vld [vmem:[%s321 + $0x34] sm:$0xf]
        %v449 = vld [vmem:[%s321 + $0x38] sm:$0xf]
        %v450 = vld [vmem:[%s321 + $0x3c] sm:$0xf]
        %v451 = vld [vmem:[%s378] sm:$0xff]
        %v452 = vld [vmem:[%s378 + $0x8] sm:$0x3]
        %453 = vadd.xlane.f32.xlu0 %v386
        %v454 = vpop.xlane.xlu0 %453
        %v455 = vmul.f32 %v454, 0.03125
        %v456 = vmul.f32 %v386, %v386
        %457 = vadd.xlane.f32.xlu0 %v456
        %v458 = vpop.xlane.xlu0 %457
        %v459 = vmul.f32 %v458, 0.03125
        %v460 = vmul.f32 %v455, %v455
        %v461 = vsub.f32 %v459, %v460
        %v462 = vsub.f32 %v386, %v455
        %v463 = vadd.f32 %v461, 1e-05
        %v464 = vrsqrt.pop %v463
        %v465 = vmul.f32 %v464, %v463
        %v466 = vmul.f32 %v465, %v464
        %v467 = vmul.f32 0.5, %v466
        %v468 = vsub.f32 1.5, %v467
        %v469 = vmul.f32 %v464, %v468
        %vm470 = vweird.f32 %v463
        %vm471 = vweird.f32 %v464
        %vm472 = vmor %vm470, %vm471
        %v473 = vsel %vm472, %v464, %v469
        %v474 = vmul.f32 %v462, %v473
        %v475 = vperm.slane %v451, 0
        %v476 = vmul.f32 %v474, %v475
        %v477 = vperm.slane %v451, 1
        %v478 = vadd.f32 %v476, %v477
        %v479 = vpack.c.bf16 %v478, %v478
        %v512 = vunpack.c.l.b16 %v387
        %v513 = vunpack.c.h.b16 %v387
        %v514 = vunpack.c.l.b16 %v388
        %v515 = vunpack.c.l.b16 %v390
        %v516 = vunpack.c.h.b16 %v390
        %v517 = vunpack.c.l.b16 %v391
        %v518 = vunpack.c.l.b16 %v393
        %v519 = vunpack.c.h.b16 %v393
        %v520 = vunpack.c.l.b16 %v394
        %v521 = vunpack.c.l.b16 %v396
        %v522 = vunpack.c.h.b16 %v396
        %v523 = vunpack.c.l.b16 %v397
        %v524 = vunpack.c.l.b16 %v399
        %v525 = vunpack.c.h.b16 %v399
        %v526 = vunpack.c.l.b16 %v400
        %v527 = vunpack.c.l.b16 %v402
        %v528 = vunpack.c.h.b16 %v402
        %v529 = vunpack.c.l.b16 %v403
        %v530 = vunpack.c.l.b16 %v405
        %v531 = vunpack.c.h.b16 %v405
        %v532 = vunpack.c.l.b16 %v406
        %v533 = vunpack.c.l.b16 %v408
        %v534 = vunpack.c.h.b16 %v408
        %v535 = vunpack.c.l.b16 %v409
        %v536 = vunpack.c.l.b16 %v411
        %v537 = vunpack.c.h.b16 %v411
        %v538 = vunpack.c.l.b16 %v412
        %v539 = vunpack.c.l.b16 %v414
        %v540 = vunpack.c.h.b16 %v414
        %v541 = vunpack.c.l.b16 %v415
        %v542 = vunpack.c.l.b16 %v417
        %v543 = vunpack.c.h.b16 %v417
        %v544 = vunpack.c.l.b16 %v418
        %v545 = vunpack.c.l.b16 %v420
        %v546 = vunpack.c.h.b16 %v420
        %v547 = vunpack.c.l.b16 %v421
        %v548 = vunpack.c.l.b16 %v423
        %v549 = vunpack.c.h.b16 %v423
        %v550 = vunpack.c.l.b16 %v424
        %v551 = vunpack.c.l.b16 %v426
        %v552 = vunpack.c.h.b16 %v426
        %v553 = vunpack.c.l.b16 %v427
        %v554 = vunpack.c.l.b16 %v429
        %v555 = vunpack.c.h.b16 %v429
        %v556 = vunpack.c.l.b16 %v430
        %v557 = vunpack.c.l.b16 %v432
        %v558 = vunpack.c.h.b16 %v432
        %v559 = vunpack.c.l.b16 %v433
        %v560 = vpack.c.b16 %v515, %v512
        %v561 = vpack.c.b16 %v516, %v513
        %v562 = vpack.c.b16 %v517, %v514
        %v563 = vpack.c.b16 %v521, %v518
        %v564 = vpack.c.b16 %v522, %v519
        %v565 = vpack.c.b16 %v523, %v520
        %v566 = vpack.c.b16 %v527, %v524
        %v567 = vpack.c.b16 %v528, %v525
        %v568 = vpack.c.b16 %v529, %v526
        %v569 = vpack.c.b16 %v533, %v530
        %v570 = vpack.c.b16 %v534, %v531
        %v571 = vpack.c.b16 %v535, %v532
        %v572 = vpack.c.b16 %v539, %v536
        %v573 = vpack.c.b16 %v540, %v537
        %v574 = vpack.c.b16 %v541, %v538
        %v575 = vpack.c.b16 %v545, %v542
        %v576 = vpack.c.b16 %v546, %v543
        %v577 = vpack.c.b16 %v547, %v544
        %v578 = vpack.c.b16 %v551, %v548
        %v579 = vpack.c.b16 %v552, %v549
        %v580 = vpack.c.b16 %v553, %v550
        %v581 = vpack.c.b16 %v557, %v554
        %v582 = vpack.c.b16 %v558, %v555
        %v583 = vpack.c.b16 %v559, %v556
        %608 = vmatpush.bf16.msra.mxu0 %v581
        %609 = vmatpush.bf16.msra.mxu0 %v578
        %610 = vmatpush.bf16.msra.mxu0 %v575
        %611 = vmatpush.bf16.msra.mxu0 %v572
        %612 = vmatpush.bf16.msra.mxu0 %v569
        %613 = vmatpush.bf16.msra.mxu0 %v566
        %614 = vmatpush.bf16.msra.mxu0 %v563
        %615 = vmatpush.bf16.msra.mxu0 %v560
        %616 = vmatmul.bf16.gmra.mxu0 %v479
        %v617 = vpop.f32.mrf.mxu0
        %v618 = vadd.f32 0.0, %v617
        %v619 = vpop.f32.mrf.mxu0
        %620 = vdwg.mxu0
        %621 = vmatpush.bf16.msra.mxu0 %v582
        %622 = vmatpush.bf16.msra.mxu0 %v579
        %623 = vmatpush.bf16.msra.mxu0 %v576
        %624 = vmatpush.bf16.msra.mxu0 %v573
        %625 = vmatpush.bf16.msra.mxu0 %v570
        %626 = vmatpush.bf16.msra.mxu0 %v567
        %627 = vmatpush.bf16.msra.mxu0 %v564
        %628 = vmatpush.bf16.msra.mxu0 %v561
        %629 = vmatmul.bf16.gmra.mxu0 %v479
        %v630 = vpop.f32.mrf.mxu0
        %v631 = vadd.f32 0.0, %v630
        %v632 = vpop.f32.mrf.mxu0
        %633 = vdwg.mxu0
        %634 = vmatpush.bf16.msra.mxu0 %v583
        %635 = vmatpush.bf16.msra.mxu0 %v580
        %636 = vmatpush.bf16.msra.mxu0 %v577
        %637 = vmatpush.bf16.msra.mxu0 %v574
        %638 = vmatpush.bf16.msra.mxu0 %v571
        %639 = vmatpush.bf16.msra.mxu0 %v568
        %640 = vmatpush.bf16.msra.mxu0 %v565
        %641 = vmatpush.bf16.msra.mxu0 %v562
        %642 = vmatmul.bf16.gmra.mxu0 %v479
        %v643 = vpop.f32.mrf.mxu0
        %v644 = vadd.f32 0.0, %v643
        %v645 = vpop.f32.mrf.mxu0
        %646 = vdwg.mxu0
        %v647 = vperm.slane %v451, 2
        %v648 = vadd.f32 %v618, %v647
        %v649 = vpack.c.bf16 %v648, %v648
        %v650 = vperm.slane %v451, 3
        %v651 = vadd.f32 %v631, %v650
        %v652 = vpack.c.bf16 %v651, %v651
        %v653 = vperm.slane %v451, 4
        %v654 = vadd.f32 %v644, %v653
        %v655 = vpack.c.bf16 %v654, %v654
        %657 = vrot.lane.b32.xlu0 %v649, 96
        %v658 = vpop.permute.xlu0 %657
        %659 = vrot.lane.b32.xlu0 %v649, 64
        %v660 = vpop.permute.xlu0 %659
        %661 = vrot.lane.b32.xlu0 %v649, 32
        %v662 = vpop.permute.xlu0 %661
        %664 = vrot.lane.b32.xlu0 %v652, 96
        %v665 = vpop.permute.xlu0 %664
        %666 = vrot.lane.b32.xlu0 %v652, 64
        %v667 = vpop.permute.xlu0 %666
        %668 = vrot.lane.b32.xlu0 %v652, 32
        %v669 = vpop.permute.xlu0 %668
        %671 = vrot.lane.b32.xlu0 %v655, 96
        %v672 = vpop.permute.xlu0 %671
        %673 = vrot.lane.b32.xlu0 %v655, 64
        %v674 = vpop.permute.xlu0 %673
        %675 = vrot.lane.b32.xlu0 %v655, 32
        %v676 = vpop.permute.xlu0 %675
        %vm677 = vcmask 261120
        %v679 = vsel %vm677, %v649, 0
        %v682 = vsel %vm677, %v652, 0
        %684 = vmatpush.bf16.xpose.msra.mxu0 0
        %685 = vmatpush.bf16.xpose.msra.mxu0 0
        %686 = vmatpush.bf16.xpose.msra.mxu0 0
        %687 = vmatpush.bf16.xpose.msra.mxu0 0
        %688 = vmatpush.bf16.xpose.msra.mxu0 0
        %689 = vmatpush.bf16.xpose.msra.mxu0 0
        %690 = vmatpush.bf16.xpose.msra.mxu0 0
        %691 = vmatpush.bf16.xpose.msra.mxu0 %v682
        %692 = vmatmul.bf16.gmra.mxu0 %v679
        %v693 = vpop.f32.mrf.mxu0
        %v694 = vadd.f32 0.0, %v693
        %v695 = vpop.f32.mrf.mxu0
        %696 = vdwg.mxu0
        %v698 = vsel %vm677, %v658, 0
        %v701 = vsel %vm677, %v665, 0
        %703 = vmatpush.bf16.xpose.msra.mxu0 0
        %704 = vmatpush.bf16.xpose.msra.mxu0 0
        %705 = vmatpush.bf16.xpose.msra.mxu0 0
        %706 = vmatpush.bf16.xpose.msra.mxu0 0
        %707 = vmatpush.bf16.xpose.msra.mxu0 0
        %708 = vmatpush.bf16.xpose.msra.mxu0 0
        %709 = vmatpush.bf16.xpose.msra.mxu0 0
        %710 = vmatpush.bf16.xpose.msra.mxu0 %v701
        %711 = vmatmul.bf16.gmra.mxu0 %v698
        %v712 = vpop.f32.mrf.mxu0
        %v713 = vadd.f32 0.0, %v712
        %v714 = vpop.f32.mrf.mxu0
        %715 = vdwg.mxu0
        %v717 = vsel %vm677, %v660, 0
        %v720 = vsel %vm677, %v667, 0
        %722 = vmatpush.bf16.xpose.msra.mxu0 0
        %723 = vmatpush.bf16.xpose.msra.mxu0 0
        %724 = vmatpush.bf16.xpose.msra.mxu0 0
        %725 = vmatpush.bf16.xpose.msra.mxu0 0
        %726 = vmatpush.bf16.xpose.msra.mxu0 0
        %727 = vmatpush.bf16.xpose.msra.mxu0 0
        %728 = vmatpush.bf16.xpose.msra.mxu0 0
        %729 = vmatpush.bf16.xpose.msra.mxu0 %v720
        %730 = vmatmul.bf16.gmra.mxu0 %v717
        %v731 = vpop.f32.mrf.mxu0
        %v732 = vadd.f32 0.0, %v731
        %v733 = vpop.f32.mrf.mxu0
        %734 = vdwg.mxu0
        %v736 = vsel %vm677, %v662, 0
        %v739 = vsel %vm677, %v669, 0
        %741 = vmatpush.bf16.xpose.msra.mxu0 0
        %742 = vmatpush.bf16.xpose.msra.mxu0 0
        %743 = vmatpush.bf16.xpose.msra.mxu0 0
        %744 = vmatpush.bf16.xpose.msra.mxu0 0
        %745 = vmatpush.bf16.xpose.msra.mxu0 0
        %746 = vmatpush.bf16.xpose.msra.mxu0 0
        %747 = vmatpush.bf16.xpose.msra.mxu0 0
        %748 = vmatpush.bf16.xpose.msra.mxu0 %v739
        %749 = vmatmul.bf16.gmra.mxu0 %v736
        %v750 = vpop.f32.mrf.mxu0
        %v751 = vadd.f32 0.0, %v750
        %v752 = vpop.f32.mrf.mxu0
        %753 = vdwg.mxu0
        %v754 = vmul.f32 %v694, 0.35355338
        %v755 = vmul.f32 %v713, 0.35355338
        %v756 = vmul.f32 %v732, 0.35355338
        %v757 = vmul.f32 %v751, 0.35355338
        %vm758 = vcmask 64512
        %v759 = vsel %vm758, %v754, -inf
        %760 = vmax.xlane.f32.xlu0 %v759
        %v761 = vpop.xlane.xlu0 %760
        %v762 = vsel %vm758, %v755, -inf
        %763 = vmax.xlane.f32.xlu0 %v762
        %v764 = vpop.xlane.xlu0 %763
        %v765 = vsel %vm758, %v756, -inf
        %766 = vmax.xlane.f32.xlu0 %v765
        %v767 = vpop.xlane.xlu0 %766
        %v768 = vsel %vm758, %v757, -inf
        %769 = vmax.xlane.f32.xlu0 %v768
        %v770 = vpop.xlane.xlu0 %769
        %v771 = vsub.f32 %v754, %v761
        %v772 = vsub.f32 %v755, %v764
        %v773 = vsub.f32 %v756, %v767
        %v774 = vsub.f32 %v757, %v770
        %v775 = vmul.f32 %v771, 1.442695
        %v776 = vpow.pop %v775
        %v777 = vmul.f32 %v772, 1.442695
        %v778 = vpow.pop %v777
        %v779 = vmul.f32 %v773, 1.442695
        %v780 = vpow.pop %v779
        %v781 = vmul.f32 %v774, 1.442695
        %v782 = vpow.pop %v781
        %v783 = vsel %vm758, %v776, 0.0
        %784 = vadd.xlane.f32.xlu0 %v783
        %v785 = vpop.xlane.xlu0 %784
        %v786 = vsel %vm758, %v778, 0.0
        %787 = vadd.xlane.f32.xlu0 %v786
        %v788 = vpop.xlane.xlu0 %787
        %v789 = vsel %vm758, %v780, 0.0
        %790 = vadd.xlane.f32.xlu0 %v789
        %v791 = vpop.xlane.xlu0 %790
        %v792 = vsel %vm758, %v782, 0.0
        %793 = vadd.xlane.f32.xlu0 %v792
        %v794 = vpop.xlane.xlu0 %793
        %v795 = vrcp.pop %v785
        %v796 = vrcp.pop %v788
        %v797 = vrcp.pop %v791
        %v798 = vrcp.pop %v794
        %v799 = vmul.f32 %v776, %v795
        %v800 = vmul.f32 %v778, %v796
        %v801 = vmul.f32 %v780, %v797
        %v802 = vmul.f32 %v782, %v798
        %v803 = vpack.c.bf16 %v799, %v799
        %v804 = vpack.c.bf16 %v800, %v800
        %v805 = vpack.c.bf16 %v801, %v801
        %v806 = vpack.c.bf16 %v802, %v802
        %v808 = vsel %vm758, %v803, 0
        %vm810 = vcmask 1043456
        %v812 = vsel %vm810, %v655, 0
        %814 = vmatpush.bf16.msra.mxu0 0
        %815 = vmatpush.bf16.msra.mxu0 0
        %816 = vmatpush.bf16.msra.mxu0 0
        %817 = vmatpush.bf16.msra.mxu0 0
        %818 = vmatpush.bf16.msra.mxu0 0
        %819 = vmatpush.bf16.msra.mxu0 0
        %820 = vmatpush.bf16.msra.mxu0 0
        %821 = vmatpush.bf16.msra.mxu0 %v812
        %822 = vmatmul.bf16.gmra.mxu0 %v808
        %v823 = vpop.f32.mrf.mxu0
        %v824 = vadd.f32 0.0, %v823
        %v825 = vpop.f32.mrf.mxu0
        %826 = vdwg.mxu0
        %v828 = vsel %vm758, %v804, 0
        %v831 = vsel %vm810, %v672, 0
        %833 = vmatpush.bf16.msra.mxu0 0
        %834 = vmatpush.bf16.msra.mxu0 0
        %835 = vmatpush.bf16.msra.mxu0 0
        %836 = vmatpush.bf16.msra.mxu0 0
        %837 = vmatpush.bf16.msra.mxu0 0
        %838 = vmatpush.bf16.msra.mxu0 0
        %839 = vmatpush.bf16.msra.mxu0 0
        %840 = vmatpush.bf16.msra.mxu0 %v831
        %841 = vmatmul.bf16.gmra.mxu0 %v828
        %v842 = vpop.f32.mrf.mxu0
        %v843 = vadd.f32 0.0, %v842
        %v844 = vpop.f32.mrf.mxu0
        %845 = vdwg.mxu0
        %v847 = vsel %vm758, %v805, 0
        %v850 = vsel %vm810, %v674, 0
        %852 = vmatpush.bf16.msra.mxu0 0
        %853 = vmatpush.bf16.msra.mxu0 0
        %854 = vmatpush.bf16.msra.mxu0 0
        %855 = vmatpush.bf16.msra.mxu0 0
        %856 = vmatpush.bf16.msra.mxu0 0
        %857 = vmatpush.bf16.msra.mxu0 0
        %858 = vmatpush.bf16.msra.mxu0 0
        %859 = vmatpush.bf16.msra.mxu0 %v850
        %860 = vmatmul.bf16.gmra.mxu0 %v847
        %v861 = vpop.f32.mrf.mxu0
        %v862 = vadd.f32 0.0, %v861
        %v863 = vpop.f32.mrf.mxu0
        %864 = vdwg.mxu0
        %v866 = vsel %vm758, %v806, 0
        %v869 = vsel %vm810, %v676, 0
        %871 = vmatpush.bf16.msra.mxu0 0
        %872 = vmatpush.bf16.msra.mxu0 0
        %873 = vmatpush.bf16.msra.mxu0 0
        %874 = vmatpush.bf16.msra.mxu0 0
        %875 = vmatpush.bf16.msra.mxu0 0
        %876 = vmatpush.bf16.msra.mxu0 0
        %877 = vmatpush.bf16.msra.mxu0 0
        %878 = vmatpush.bf16.msra.mxu0 %v869
        %879 = vmatmul.bf16.gmra.mxu0 %v866
        %v880 = vpop.f32.mrf.mxu0
        %v881 = vadd.f32 0.0, %v880
        %v882 = vpop.f32.mrf.mxu0
        %883 = vdwg.mxu0
        %885 = vrot.lane.b32.xlu0 %v843, 32
        %v886 = vpop.permute.xlu0 %885
        %889 = vrot.lane.b32.xlu0 %v862, 64
        %v890 = vpop.permute.xlu0 %889
        %893 = vrot.lane.b32.xlu0 %v881, 96
        %v894 = vpop.permute.xlu0 %893
        %v896 = vsel %vm677, %v824, %v886
        %vm897 = vcmask 523264
        %v898 = vsel %vm897, %v896, %v890
        %vm899 = vcmask 785408
        %v900 = vsel %vm899, %v898, %v894
        %v901 = vpack.c.bf16 %v900, %v900
        %v902 = vperm.slane %v451, 5
        %v903 = vunpack.c.h.b16 %v388
        %v904 = vunpack.c.h.b16 %v391
        %v905 = vunpack.c.h.b16 %v394
        %v906 = vunpack.c.h.b16 %v397
        %v907 = vunpack.c.h.b16 %v400
        %v908 = vunpack.c.h.b16 %v403
        %v909 = vunpack.c.h.b16 %v406
        %v910 = vunpack.c.h.b16 %v409
        %v911 = vunpack.c.h.b16 %v412
        %v912 = vunpack.c.h.b16 %v415
        %v913 = vunpack.c.h.b16 %v418
        %v914 = vunpack.c.h.b16 %v421
        %v915 = vunpack.c.h.b16 %v424
        %v916 = vunpack.c.h.b16 %v427
        %v917 = vunpack.c.h.b16 %v430
        %v918 = vunpack.c.h.b16 %v433
        %v919 = vpack.c.b16 %v904, %v903
        %v920 = vpack.c.b16 %v906, %v905
        %v921 = vpack.c.b16 %v908, %v907
        %v922 = vpack.c.b16 %v910, %v909
        %v923 = vpack.c.b16 %v912, %v911
        %v924 = vpack.c.b16 %v914, %v913
        %v925 = vpack.c.b16 %v916, %v915
        %v926 = vpack.c.b16 %v918, %v917
        %935 = vmatpush.bf16.msra.mxu0 %v926
        %936 = vmatpush.bf16.msra.mxu0 %v925
        %937 = vmatpush.bf16.msra.mxu0 %v924
        %938 = vmatpush.bf16.msra.mxu0 %v923
        %939 = vmatpush.bf16.msra.mxu0 %v922
        %940 = vmatpush.bf16.msra.mxu0 %v921
        %941 = vmatpush.bf16.msra.mxu0 %v920
        %942 = vmatpush.bf16.msra.mxu0 %v919
        %943 = vmatmul.bf16.gmra.mxu0 %v901
        %v944 = vpop.f32.mrf.mxu0
        %v945 = vadd.f32 %v902, %v944
        %v946 = vpop.f32.mrf.mxu0
        %947 = vdwg.mxu0
        %v948 = vadd.f32 %v478, %v945
        %949 = vadd.xlane.f32.xlu0 %v948
        %v950 = vpop.xlane.xlu0 %949
        %v951 = vmul.f32 %v950, 0.03125
        %v952 = vmul.f32 %v948, %v948
        %953 = vadd.xlane.f32.xlu0 %v952
        %v954 = vpop.xlane.xlu0 %953
        %v955 = vmul.f32 %v954, 0.03125
        %v956 = vmul.f32 %v951, %v951
        %v957 = vsub.f32 %v955, %v956
        %v958 = vsub.f32 %v948, %v951
        %v959 = vadd.f32 %v957, 1e-05
        %v960 = vrsqrt.pop %v959
        %v961 = vmul.f32 %v960, %v959
        %v962 = vmul.f32 %v961, %v960
        %v963 = vmul.f32 0.5, %v962
        %v964 = vsub.f32 1.5, %v963
        %v965 = vmul.f32 %v960, %v964
        %vm966 = vweird.f32 %v959
        %vm967 = vweird.f32 %v960
        %vm968 = vmor %vm966, %vm967
        %v969 = vsel %vm968, %v960, %v965
        %v970 = vmul.f32 %v958, %v969
        %v971 = vperm.slane %v451, 6
        %v972 = vmul.f32 %v970, %v971
        %v973 = vperm.slane %v451, 7
        %v974 = vadd.f32 %v972, %v973
        %v975 = vpack.c.bf16 %v974, %v974
        %v976 = vperm.slane %v452, 0
        %v993 = vunpack.c.l.b16 %v389
        %v994 = vunpack.c.l.b16 %v392
        %v995 = vunpack.c.l.b16 %v395
        %v996 = vunpack.c.l.b16 %v398
        %v997 = vunpack.c.l.b16 %v401
        %v998 = vunpack.c.l.b16 %v404
        %v999 = vunpack.c.l.b16 %v407
        %v1000 = vunpack.c.l.b16 %v410
        %v1001 = vunpack.c.l.b16 %v413
        %v1002 = vunpack.c.l.b16 %v416
        %v1003 = vunpack.c.l.b16 %v419
        %v1004 = vunpack.c.l.b16 %v422
        %v1005 = vunpack.c.l.b16 %v425
        %v1006 = vunpack.c.l.b16 %v428
        %v1007 = vunpack.c.l.b16 %v431
        %v1008 = vunpack.c.l.b16 %v434
        %v1009 = vpack.c.b16 %v994, %v993
        %v1010 = vpack.c.b16 %v996, %v995
        %v1011 = vpack.c.b16 %v998, %v997
        %v1012 = vpack.c.b16 %v1000, %v999
        %v1013 = vpack.c.b16 %v1002, %v1001
        %v1014 = vpack.c.b16 %v1004, %v1003
        %v1015 = vpack.c.b16 %v1006, %v1005
        %v1016 = vpack.c.b16 %v1008, %v1007
        %1025 = vmatpush.bf16.msra.mxu0 %v1016
        %1026 = vmatpush.bf16.msra.mxu0 %v1015
        %1027 = vmatpush.bf16.msra.mxu0 %v1014
        %1028 = vmatpush.bf16.msra.mxu0 %v1013
        %1029 = vmatpush.bf16.msra.mxu0 %v1012
        %1030 = vmatpush.bf16.msra.mxu0 %v1011
        %1031 = vmatpush.bf16.msra.mxu0 %v1010
        %1032 = vmatpush.bf16.msra.mxu0 %v1009
        %1033 = vmatmul.bf16.gmra.mxu0 %v975
        %v1034 = vpop.f32.mrf.mxu0
        %v1035 = vadd.f32 %v976, %v1034
        %v1036 = vpop.f32.mrf.mxu0
        %1037 = vdwg.mxu0
        %v1038 = vmax.f32 %v1035, 0.0
        %v1039 = vpack.c.bf16 %v1038, %v1038
        %v1040 = vperm.slane %v452, 1
        %v1057 = vunpack.c.l.b16 %v435
        %v1058 = vunpack.c.l.b16 %v436
        %v1059 = vunpack.c.l.b16 %v437
        %v1060 = vunpack.c.l.b16 %v438
        %v1061 = vunpack.c.l.b16 %v439
        %v1062 = vunpack.c.l.b16 %v440
        %v1063 = vunpack.c.l.b16 %v441
        %v1064 = vunpack.c.l.b16 %v442
        %v1065 = vunpack.c.l.b16 %v443
        %v1066 = vunpack.c.l.b16 %v444
        %v1067 = vunpack.c.l.b16 %v445
        %v1068 = vunpack.c.l.b16 %v446
        %v1069 = vunpack.c.l.b16 %v447
        %v1070 = vunpack.c.l.b16 %v448
        %v1071 = vunpack.c.l.b16 %v449
        %v1072 = vunpack.c.l.b16 %v450
        %v1073 = vpack.c.b16 %v1058, %v1057
        %v1074 = vpack.c.b16 %v1060, %v1059
        %v1075 = vpack.c.b16 %v1062, %v1061
        %v1076 = vpack.c.b16 %v1064, %v1063
        %v1077 = vpack.c.b16 %v1066, %v1065
        %v1078 = vpack.c.b16 %v1068, %v1067
        %v1079 = vpack.c.b16 %v1070, %v1069
        %v1080 = vpack.c.b16 %v1072, %v1071
        %1089 = vmatpush.bf16.msra.mxu0 %v1080
        %1090 = vmatpush.bf16.msra.mxu0 %v1079
        %1091 = vmatpush.bf16.msra.mxu0 %v1078
        %1092 = vmatpush.bf16.msra.mxu0 %v1077
        %1093 = vmatpush.bf16.msra.mxu0 %v1076
        %1094 = vmatpush.bf16.msra.mxu0 %v1075
        %1095 = vmatpush.bf16.msra.mxu0 %v1074
        %1096 = vmatpush.bf16.msra.mxu0 %v1073
        %1097 = vmatmul.bf16.gmra.mxu0 %v1039
        %v1098 = vpop.f32.mrf.mxu0
        %v1099 = vadd.f32 %v1040, %v1098
        %v1100 = vpop.f32.mrf.mxu0
        %1101 = vdwg.mxu0
        %v1102 = vadd.f32 %v948, %v1099
        %1103 = vst [vmem:[#allocation2] sm:$0xff] %v1102
        %p1104 = scmp.eq.s32.totalorder %s31, 1
        // Predicated region
        $region61: #{tpu_custom_call.1} parent=43 // pred_check
          %p1105 = pneg %p1104
        $region62: #{tpu_custom_call.1} parent=43 // pred_check_branch
          %1107 = sbr.rel (%p1105) target = $region64
        $region63: #{tpu_custom_call.1} parent=43 // pred_region
          %v1108 = vpack.c.bf16 %v1102, %v1102
          %v1109 = vld [vmem:[#allocation8] sm:$0xf]
          %v1110 = vld [vmem:[#allocation8 + $0x4] sm:$0xf]
          %v1111 = vld [vmem:[#allocation8 + $0x8] sm:$0xf]
          %v1112 = vld [vmem:[#allocation8 + $0xc] sm:$0xf]
          %v1113 = vld [vmem:[#allocation8 + $0x10] sm:$0xf]
          %v1114 = vld [vmem:[#allocation8 + $0x14] sm:$0xf]
          %v1115 = vld [vmem:[#allocation8 + $0x18] sm:$0xf]
          %v1116 = vld [vmem:[#allocation8 + $0x1c] sm:$0xf]
          %v1117 = vld [vmem:[#allocation8 + $0x20] sm:$0xf]
          %v1118 = vld [vmem:[#allocation8 + $0x24] sm:$0xf]
          %v1119 = vld [vmem:[#allocation8 + $0x28] sm:$0xf]
          %v1120 = vld [vmem:[#allocation8 + $0x2c] sm:$0xf]
          %v1121 = vld [vmem:[#allocation8 + $0x30] sm:$0xf]
          %v1122 = vld [vmem:[#allocation8 + $0x34] sm:$0xf]
          %v1123 = vld [vmem:[#allocation8 + $0x38] sm:$0xf]
          %v1124 = vld [vmem:[#allocation8 + $0x3c] sm:$0xf]
          %v1125 = vld [vmem:[%s5] sm:$0x1]
          %v1127 = vperm.slane %v1125, 0
          %v1145 = vunpack.c.l.b16 %v1109
          %v1146 = vunpack.c.l.b16 %v1110
          %v1147 = vunpack.c.l.b16 %v1111
          %v1148 = vunpack.c.l.b16 %v1112
          %v1149 = vunpack.c.l.b16 %v1113
          %v1150 = vunpack.c.l.b16 %v1114
          %v1151 = vunpack.c.l.b16 %v1115
          %v1152 = vunpack.c.l.b16 %v1116
          %v1153 = vunpack.c.l.b16 %v1117
          %v1154 = vunpack.c.l.b16 %v1118
          %v1155 = vunpack.c.l.b16 %v1119
          %v1156 = vunpack.c.l.b16 %v1120
          %v1157 = vunpack.c.l.b16 %v1121
          %v1158 = vunpack.c.l.b16 %v1122
          %v1159 = vunpack.c.l.b16 %v1123
          %v1160 = vunpack.c.l.b16 %v1124
          %v1161 = vpack.c.b16 %v1146, %v1145
          %v1162 = vpack.c.b16 %v1148, %v1147
          %v1163 = vpack.c.b16 %v1150, %v1149
          %v1164 = vpack.c.b16 %v1152, %v1151
          %v1165 = vpack.c.b16 %v1154, %v1153
          %v1166 = vpack.c.b16 %v1156, %v1155
          %v1167 = vpack.c.b16 %v1158, %v1157
          %v1168 = vpack.c.b16 %v1160, %v1159
          %1177 = vmatpush.bf16.msra.mxu0 %v1168
          %1178 = vmatpush.bf16.msra.mxu0 %v1167
          %1179 = vmatpush.bf16.msra.mxu0 %v1166
          %1180 = vmatpush.bf16.msra.mxu0 %v1165
          %1181 = vmatpush.bf16.msra.mxu0 %v1164
          %1182 = vmatpush.bf16.msra.mxu0 %v1163
          %1183 = vmatpush.bf16.msra.mxu0 %v1162
          %1184 = vmatpush.bf16.msra.mxu0 %v1161
          %1185 = vmatmul.bf16.gmra.mxu0 %v1108
          %v1186 = vpop.f32.mrf.mxu0
          %v1187 = vadd.f32 %v1127, %v1186
          %v1188 = vpop.f32.mrf.mxu0
          %1189 = vdwg.mxu0
          %1190 = vst [vmem:[%s369] sm:$0xff] %v1187
        $region64: #{tpu_custom_call.1} parent=43 // pred_fallthru
          _
        %s1191 = sand.u32 %s192, 1
        %s1192 = scalar_lea.sflag [#allocation5], %s1191
        %s1193 = sand.u32 %s192, 1
        %s1194 = smul.addr %s1193, 8
        %s1195 = scalar_lea.vmem [#allocation9], %s1194
        // Predicated region
        $region65: #{tpu_custom_call.1} parent=43 // pred_check
          %p1196 = pneg %p202
        $region66: #{tpu_custom_call.1} parent=43 // pred_check_branch
          %1198 = sbr.rel (%p1196) target = $region68
        $region67: #{tpu_custom_call.1} parent=43 // pred_region
          %1200 = vsyncadd %s1192, 0
          %s1201 = smul.addr %s30, 8
          %s1202 = scalar_lea.hbm %s6, %s1201
          %s1204 = sshll.u32 %s1195, 4
          %s1205 = int_to_ptr.vmem [resolvable:$true] %s1204
          %s1206 = sshll.u32 %s1202, 4
          %s1207 = int_to_ptr.hbm [resolvable:$true] %s1206
          %1209 = dma.vmem_to_hbm [thread:$0]  %s1205, 128, %s1207, %s1192
        $region68: #{tpu_custom_call.1} parent=43 // pred_fallthru
          _
      $region44: #{tpu_custom_call.1} parent=5 // pred_fallthru
        _
      %p1210 = scmp.le.s32.totalorder 2, %s21
      // Predicated region
      $region69: #{tpu_custom_call.1} parent=5 // pred_check
        %p1211 = pneg %p1210
      $region70: #{tpu_custom_call.1} parent=5 // pred_check_branch
        %1213 = sbr.rel (%p1211) target = $region72
      $region71: #{tpu_custom_call.1} parent=5 // pred_region
        %s1214 = ssub.s32 %s21, 2
        // Predicated region
        $region73: #{tpu_custom_call.1} parent=71 // pred_check
          %p1215 = pneg %p208
        $region74: #{tpu_custom_call.1} parent=71 // pred_check_branch
          %1217 = sbr.rel (%p1215) target = $region76
        $region75: #{tpu_custom_call.1} parent=71 // pred_region
          %s1218 = sand.u32 %s193, 1
          %s1219 = scalar_lea.sflag [#allocation5], %s1218
          %s1220 = sand.u32 %s193, 1
          %s1221 = smul.addr %s1220, 8
          %s1222 = scalar_lea.vmem [#allocation9], %s1221
          %1224 = dma.done %s1219, 128
        $region76: #{tpu_custom_call.1} parent=71 // pred_fallthru
          _
      $region72: #{tpu_custom_call.1} parent=5 // pred_fallthru
        _
    $region6: #{tpu_custom_call.1} parent=1 // loop_footer
      %s25 = sadd.s32 1, %s21
    $region7: #{tpu_custom_call.1} parent=1 // loop_footer_branch
      %20 = sbr.rel target = $region3
    $region8: #{tpu_custom_call.1} parent=1 // loop_exit
      _
    %1225 = vsyncpa [#allocation4], 1
    %s1226 = scalar_lea.sflag [#allocation4], 1
    %1227 = vsyncpa %s1226, 1
    %1228 = vsyncpa [#allocation7], 1
    %s1229 = scalar_lea.sflag [#allocation7], 1
    %1230 = vsyncpa %s1229, 1
    %1231 = vsyncpa [#allocation5], 1
    %s1232 = scalar_lea.sflag [#allocation5], 1
    %1233 = vsyncpa %s1232, 1

</llo_original>
